<compile_context>
chip_gen: v6e
topology: v6e:2x2x1
jax: 0.10.0
libtpu: 0.0.40
codegen_flags: <defaults>
</compile_context>

<pallas_src>
import jax
import jax.numpy as jnp
from jax import lax
from jax.experimental import pallas as pl
from jax.experimental.pallas import tpu as pltpu

# Problem sizes implied by the module
N, C_IN, H, W = 3, 20, 16, 16
C_OUT = 23
KH, KW = 3, 5
PH, PW = 1, 2
DH, DW = 2, 1
H_PAD, W_PAD = H + 2 * PH, W + 2 * PW            # 18, 20
H_OUT = H + 2 * PH - DH * (KH - 1)               # 14
W_OUT = W + 2 * PW - DW * (KW - 1)               # 16
PIX = N * H_OUT * W_OUT                          # 672  (multiple of 8)
K_DIM = KH * KW * C_IN                           # 300  (im2col contraction depth)
K_PAD = 384                                      # 3*128 -> tile-aligned contraction
C_OUT_PAD = 128                                  # lane-dense output channels


def _is_v7x() -> bool:
    """Best-effort chip detection; only used to choose 1 vs 2 row blocks."""
    try:
        kind = jax.devices()[0].device_kind.lower()
    except Exception:
        return False
    return ("v7" in kind) or ("7x" in kind)


# v7x has 2 TensorCores/chip -> split the pixel axis in two parallel blocks.
# v5e/v6e have a single TC -> one block (no serial-grid step overhead).
NUM_ROW_BLOCKS = 2 if _is_v7x() else 1
ROWS_PER_BLOCK = PIX // NUM_ROW_BLOCKS           # 672 or 336, both 8-aligned


def conv_tanh_kernel(p_ref, w_ref, b_ref, o_ref):
    # p_ref: (ROWS_PER_BLOCK, K_PAD)   im2col patch slab (zero-padded K)
    # w_ref: (K_PAD, C_OUT_PAD)        im2col-ordered filters (zero-padded)
    # b_ref: (1, C_OUT_PAD)            bias (zero-padded)
    # o_ref: (ROWS_PER_BLOCK, C_OUT_PAD)
    acc = jnp.dot(p_ref[...], w_ref[...],
                  preferred_element_type=jnp.float32)      # single deep MXU matmul
    o_ref[...] = jnp.tanh(acc + b_ref[...])                # bias + tanh (EUP), dense store


@jax.jit
def conv2d_tanh(x_nchw, weight, bias):
    """x_nchw: (N, C_IN, H, W); weight: (C_OUT, C_IN, KH, KW); bias: (C_OUT,)."""
    # ---- layout glue (fused XLA, outside the Pallas kernel) -----------------
    x_nhwc = jnp.transpose(x_nchw, (0, 2, 3, 1))                     # (N, H, W, C_IN)
    x_pad = jnp.pad(x_nhwc, ((0, 0), (PH, PH), (PW, PW), (0, 0)))    # (N, H_PAD, W_PAD, C_IN)

    # im2col built in the wrapper; column order = ((kh*KW + kw)*C_IN + c),
    # matching the weight reshape below.
    taps = [
        x_pad[:, kh * DH: kh * DH + H_OUT, kw * DW: kw * DW + W_OUT, :]
        for kh in range(KH) for kw in range(KW)
    ]
    patches = jnp.concatenate(taps, axis=-1).reshape(PIX, K_DIM)     # (672, 300)
    patches = jnp.pad(patches, ((0, 0), (0, K_PAD - K_DIM)))         # (672, 384), zero-padded K

    # OIHW -> (KH, KW, C_IN, C_OUT) -> (K_DIM, C_OUT); pad K->384, C_OUT->128 (exact zeros).
    w2d = jnp.transpose(weight, (2, 3, 1, 0)).reshape(K_DIM, C_OUT)
    w2d = jnp.pad(w2d, ((0, K_PAD - K_DIM), (0, C_OUT_PAD - C_OUT))) # (384, 128)
    b2d = jnp.pad(bias, (0, C_OUT_PAD - C_OUT)).reshape(1, C_OUT_PAD)

    # ---- pure matmul + bias + tanh kernel -----------------------------------
    out_flat = pl.pallas_call(
        conv_tanh_kernel,
        out_shape=jax.ShapeDtypeStruct((PIX, C_OUT_PAD), jnp.float32),
        grid=(NUM_ROW_BLOCKS,),
        in_specs=[
            pl.BlockSpec((ROWS_PER_BLOCK, K_PAD), lambda i: (i, 0)),
            pl.BlockSpec((K_PAD, C_OUT_PAD), lambda i: (0, 0)),
            pl.BlockSpec((1, C_OUT_PAD), lambda i: (0, 0)),
        ],
        out_specs=pl.BlockSpec((ROWS_PER_BLOCK, C_OUT_PAD), lambda i: (i, 0)),
        compiler_params=pltpu.CompilerParams(dimension_semantics=("parallel",)),
    )(patches, w2d, b2d)                                             # (672, 128)

    out = out_flat[:, :C_OUT].reshape(N, H_OUT, W_OUT, C_OUT)
    return jnp.transpose(out, (0, 3, 1, 2))                          # (N, C_OUT, H_OUT, W_OUT)


def _reference(x_nchw, weight, bias):
    y = lax.conv_general_dilated(
        x_nchw, weight,
        window_strides=(1, 1),
        padding=((PH, PH), (PW, PW)),
        rhs_dilation=(DH, DW),
        dimension_numbers=("NCHW", "OIHW", "NCHW"),
    )
    return jnp.tanh(y + bias.reshape(1, C_OUT, 1, 1))


if __name__ == "__main__":
    key = jax.random.PRNGKey(0)
    kx, kw, kb = jax.random.split(key, 3)

    # Deterministic parameter init (PyTorch-like uniform fan-in bound).
    fan_in = C_IN * KH * KW
    bound = 1.0 / (fan_in ** 0.5)
    weight = jax.random.uniform(kw, (C_OUT, C_IN, KH, KW), jnp.float32, -bound, bound)
    bias = jax.random.uniform(kb, (C_OUT,), jnp.float32, -bound, bound)

    x = jax.random.normal(kx, (N, C_IN, H, W), jnp.float32)

    out = conv2d_tanh(x, weight, bias)
    out = jax.block_until_ready(out)

    ref = jax.block_until_ready(_reference(x, weight, bias))
    assert out.shape == (N, C_OUT, H_OUT, W_OUT), out.shape
    assert jnp.allclose(out, ref, atol=1e-4, rtol=1e-4), "mismatch vs reference conv"

    print("KERNEL_OK")
</pallas_src>

<mosaic_0001>
module attributes {stable_mosaic.version = 11 : i64} {
  func.func @conv_tanh_kernel(%arg0: i32, %arg1: memref<672x384xf32, #tpu.memory_space<vmem>>, %arg2: memref<384x128xf32, #tpu.memory_space<vmem>>, %arg3: memref<1x128xf32, #tpu.memory_space<vmem>>, %arg4: memref<672x128xf32, #tpu.memory_space<vmem>>) attributes {dimension_semantics = [#tpu.dimension_semantics<parallel>], iteration_bounds = array<i64: 1>, scalar_prefetch = 0 : i64, scratch_operands = 0 : i64, tpu.core_type = #tpu.core_type<tc>, window_params = [{transform_indices = @transform_0, window_bounds = array<i64: 672, 384>}, {pipeline_mode = #tpu.pipeline_mode<synchronous>, transform_indices = @transform_1, window_bounds = array<i64: 384, 128>}, {pipeline_mode = #tpu.pipeline_mode<synchronous>, transform_indices = @transform_2, window_bounds = array<i64: 1, 128>}, {transform_indices = @transform_3, window_bounds = array<i64: 672, 128>}]} {
    %c0 = arith.constant 0 : index
    %c0_0 = arith.constant 0 : index
    %0 = vector.load %arg1[%c0, %c0_0] : memref<672x384xf32, #tpu.memory_space<vmem>>, vector<672x384xf32>
    %c0_1 = arith.constant 0 : index
    %c0_2 = arith.constant 0 : index
    %1 = vector.load %arg2[%c0_1, %c0_2] : memref<384x128xf32, #tpu.memory_space<vmem>>, vector<384x128xf32>
    %cst = arith.constant dense<0.000000e+00> : vector<672x128xf32>
    %2 = tpu.matmul %0, %1, %cst {dimension_numbers = #tpu.dot_dimension_numbers<[1], [0], [0], [1], [0, 0, 1, 1], [], []>} : vector<672x384xf32>, vector<384x128xf32>, vector<672x128xf32> -> vector<672x128xf32>
    %c0_3 = arith.constant 0 : index
    %c0_4 = arith.constant 0 : index
    %3 = vector.load %arg3[%c0_3, %c0_4] : memref<1x128xf32, #tpu.memory_space<vmem>>, vector<1x128xf32>
    %4 = vector.broadcast %3 : vector<1x128xf32> to vector<672x128xf32>
    %5 = arith.addf %2, %4 : vector<672x128xf32>
    %6 = math.tanh %5 : vector<672x128xf32>
    %c0_5 = arith.constant 0 : index
    %c0_6 = arith.constant 0 : index
    %7 = vector.load %arg4[%c0_5, %c0_6] : memref<672x128xf32, #tpu.memory_space<vmem>>, vector<672x128xf32>
    tpu.vector_store %arg4[%c0_5, %c0_6], %6 {strides = array<i32>} : memref<672x128xf32, #tpu.memory_space<vmem>>, vector<672x128xf32>,
    return
  }
  func.func @transform_0(%arg0: i32) -> (i32, i32) {
    %c0_i32 = arith.constant 0 : i32
    %c0_i32_0 = arith.constant 0 : i32
    return %arg0, %c0_i32 : i32, i32
  }
  func.func @transform_1(%arg0: i32) -> (i32, i32) {
    %c0_i32 = arith.constant 0 : i32
    %c0_i32_0 = arith.constant 0 : i32
    %c0_i32_1 = arith.constant 0 : i32
    return %c0_i32, %c0_i32_0 : i32, i32
  }
  func.func @transform_2(%arg0: i32) -> (i32, i32) {
    %c0_i32 = arith.constant 0 : i32
    %c0_i32_0 = arith.constant 0 : i32
    %c0_i32_1 = arith.constant 0 : i32
    return %c0_i32, %c0_i32_0 : i32, i32
  }
  func.func @transform_3(%arg0: i32) -> (i32, i32) {
    %c0_i32 = arith.constant 0 : i32
    %c0_i32_0 = arith.constant 0 : i32
    return %arg0, %c0_i32 : i32, i32
  }
}

</mosaic_0001>

<llo_original>
// kernel: conv2d_tanh.1
$region0: #{conv2d_tanh.1}
  #allocation0 [shape = 'u32[]', space=smem, size = 0x4, offset = 0x4, fixed_abs, tag = 'smem constant byte address 0x4 - core index']
  #allocation1 [shape = 'u32[144,128]{1,0:T(1,128)}', space=vmem, size = 0x12000, scoped, tag = 'internal scratch']
  %s0 = inlined_call_operand.vmem [shape: f32[672,384], index: 0, kind: input, shape index: {}]
  %s1 = inlined_call_operand.vmem [shape: f32[384,128], index: 1, kind: input, shape index: {}]
  %s2 = inlined_call_operand.vmem [shape: f32[1,128], index: 2, kind: input, shape index: {}]
  %s3 = inlined_call_operand.hbm [shape: f32[672,128], index: 3, kind: output, shape index: {}]
  %s4 = sld [smem:[#allocation0]]
  $region22: #{conv2d_tanh.1} parent=0
    _
  %s6 = ssub.s32 1, %s4
  %s7 = scalar_select 0, %s6, %s4
  $region1: #{conv2d_tanh.1} parent=0
    #allocation2 [shape = 'u8[344064]{0}', space=vmem, size = 0x54000, scoped, tag = 'output window, operand 0, single buffered']
    #allocation3 [shape = 's32[1]{0}', space=sflag, size = 0x4, scoped, tag = 'scoped memory for conv2d_tanh.1']
    %8 = vsyncpa [#allocation3], 0
    // Predicated region
    $region2: #{conv2d_tanh.1} parent=1 // pred_check
      _
    $region3: #{conv2d_tanh.1} parent=1 // pred_check_branch
      %10 = sbr.rel (0) target = $region5
    $region4: #{conv2d_tanh.1} parent=1 // pred_region
      _
    $region5: #{conv2d_tanh.1} parent=1 // pred_fallthru
      _
    // Predicated region
    $region6: #{conv2d_tanh.1} parent=1 // pred_check
      _
    $region7: #{conv2d_tanh.1} parent=1 // pred_check_branch
      %12 = sbr.rel (0) target = $region9
    $region8: #{conv2d_tanh.1} parent=1 // pred_region
      _
    $region9: #{conv2d_tanh.1} parent=1 // pred_fallthru
      _
    // Predicated region
    $region10: #{conv2d_tanh.1} parent=1 // pred_check
      _
    $region11: #{conv2d_tanh.1} parent=1 // pred_check_branch
      %14 = sbr.rel (0) target = $region13
    $region12: #{conv2d_tanh.1} parent=1 // pred_region
      _
    $region13: #{conv2d_tanh.1} parent=1 // pred_fallthru
      _
    %v15 = vld [vmem:[%s0] sm:$0xff]
    %v16 = vld [vmem:[%s0 + $0x8] sm:$0xff]
    %v17 = vld [vmem:[%s0 + $0x10] sm:$0xff]
    %v18 = vld [vmem:[%s0 + $0x18] sm:$0xff]
    %v19 = vld [vmem:[%s0 + $0x20] sm:$0xff]
    %v20 = vld [vmem:[%s0 + $0x28] sm:$0xff]
    %v21 = vld [vmem:[%s0 + $0x30] sm:$0xff]
    %v22 = vld [vmem:[%s0 + $0x38] sm:$0xff]
    %v23 = vld [vmem:[%s0 + $0x40] sm:$0xff]
    %v24 = vld [vmem:[%s0 + $0x48] sm:$0xff]
    %v25 = vld [vmem:[%s0 + $0x50] sm:$0xff]
    %v26 = vld [vmem:[%s0 + $0x58] sm:$0xff]
    %v27 = vld [vmem:[%s0 + $0x60] sm:$0xff]
    %v28 = vld [vmem:[%s0 + $0x68] sm:$0xff]
    %v29 = vld [vmem:[%s0 + $0x70] sm:$0xff]
    %v30 = vld [vmem:[%s0 + $0x78] sm:$0xff]
    %v31 = vld [vmem:[%s0 + $0x80] sm:$0xff]
    %v32 = vld [vmem:[%s0 + $0x88] sm:$0xff]
    %v33 = vld [vmem:[%s0 + $0x90] sm:$0xff]
    %v34 = vld [vmem:[%s0 + $0x98] sm:$0xff]
    %v35 = vld [vmem:[%s0 + $0xa0] sm:$0xff]
    %v36 = vld [vmem:[%s0 + $0xa8] sm:$0xff]
    %v37 = vld [vmem:[%s0 + $0xb0] sm:$0xff]
    %v38 = vld [vmem:[%s0 + $0xb8] sm:$0xff]
    %v39 = vld [vmem:[%s0 + $0xc0] sm:$0xff]
    %v40 = vld [vmem:[%s0 + $0xc8] sm:$0xff]
    %v41 = vld [vmem:[%s0 + $0xd0] sm:$0xff]
    %v42 = vld [vmem:[%s0 + $0xd8] sm:$0xff]
    %v43 = vld [vmem:[%s0 + $0xe0] sm:$0xff]
    %v44 = vld [vmem:[%s0 + $0xe8] sm:$0xff]
    %v45 = vld [vmem:[%s0 + $0xf0] sm:$0xff]
    %v46 = vld [vmem:[%s0 + $0xf8] sm:$0xff]
    %v47 = vld [vmem:[%s0 + $0x100] sm:$0xff]
    %v48 = vld [vmem:[%s0 + $0x108] sm:$0xff]
    %v49 = vld [vmem:[%s0 + $0x110] sm:$0xff]
    %v50 = vld [vmem:[%s0 + $0x118] sm:$0xff]
    %v51 = vld [vmem:[%s0 + $0x120] sm:$0xff]
    %v52 = vld [vmem:[%s0 + $0x128] sm:$0xff]
    %v53 = vld [vmem:[%s0 + $0x130] sm:$0xff]
    %v54 = vld [vmem:[%s0 + $0x138] sm:$0xff]
    %v55 = vld [vmem:[%s0 + $0x140] sm:$0xff]
    %v56 = vld [vmem:[%s0 + $0x148] sm:$0xff]
    %v57 = vld [vmem:[%s0 + $0x150] sm:$0xff]
    %v58 = vld [vmem:[%s0 + $0x158] sm:$0xff]
    %v59 = vld [vmem:[%s0 + $0x160] sm:$0xff]
    %v60 = vld [vmem:[%s0 + $0x168] sm:$0xff]
    %v61 = vld [vmem:[%s0 + $0x170] sm:$0xff]
    %v62 = vld [vmem:[%s0 + $0x178] sm:$0xff]
    %v63 = vld [vmem:[%s0 + $0x180] sm:$0xff]
    %v64 = vld [vmem:[%s0 + $0x188] sm:$0xff]
    %v65 = vld [vmem:[%s0 + $0x190] sm:$0xff]
    %v66 = vld [vmem:[%s0 + $0x198] sm:$0xff]
    %v67 = vld [vmem:[%s0 + $0x1a0] sm:$0xff]
    %v68 = vld [vmem:[%s0 + $0x1a8] sm:$0xff]
    %v69 = vld [vmem:[%s0 + $0x1b0] sm:$0xff]
    %v70 = vld [vmem:[%s0 + $0x1b8] sm:$0xff]
    %v71 = vld [vmem:[%s0 + $0x1c0] sm:$0xff]
    %v72 = vld [vmem:[%s0 + $0x1c8] sm:$0xff]
    %v73 = vld [vmem:[%s0 + $0x1d0] sm:$0xff]
    %v74 = vld [vmem:[%s0 + $0x1d8] sm:$0xff]
    %v75 = vld [vmem:[%s0 + $0x1e0] sm:$0xff]
    %v76 = vld [vmem:[%s0 + $0x1e8] sm:$0xff]
    %v77 = vld [vmem:[%s0 + $0x1f0] sm:$0xff]
    %v78 = vld [vmem:[%s0 + $0x1f8] sm:$0xff]
    %v79 = vld [vmem:[%s0 + $0x200] sm:$0xff]
    %v80 = vld [vmem:[%s0 + $0x208] sm:$0xff]
    %v81 = vld [vmem:[%s0 + $0x210] sm:$0xff]
    %v82 = vld [vmem:[%s0 + $0x218] sm:$0xff]
    %v83 = vld [vmem:[%s0 + $0x220] sm:$0xff]
    %v84 = vld [vmem:[%s0 + $0x228] sm:$0xff]
    %v85 = vld [vmem:[%s0 + $0x230] sm:$0xff]
    %v86 = vld [vmem:[%s0 + $0x238] sm:$0xff]
    %v87 = vld [vmem:[%s0 + $0x240] sm:$0xff]
    %v88 = vld [vmem:[%s0 + $0x248] sm:$0xff]
    %v89 = vld [vmem:[%s0 + $0x250] sm:$0xff]
    %v90 = vld [vmem:[%s0 + $0x258] sm:$0xff]
    %v91 = vld [vmem:[%s0 + $0x260] sm:$0xff]
    %v92 = vld [vmem:[%s0 + $0x268] sm:$0xff]
    %v93 = vld [vmem:[%s0 + $0x270] sm:$0xff]
    %v94 = vld [vmem:[%s0 + $0x278] sm:$0xff]
    %v95 = vld [vmem:[%s0 + $0x280] sm:$0xff]
    %v96 = vld [vmem:[%s0 + $0x288] sm:$0xff]
    %v97 = vld [vmem:[%s0 + $0x290] sm:$0xff]
    %v98 = vld [vmem:[%s0 + $0x298] sm:$0xff]
    %v99 = vld [vmem:[%s0 + $0x2a0] sm:$0xff]
    %v100 = vld [vmem:[%s0 + $0x2a8] sm:$0xff]
    %v101 = vld [vmem:[%s0 + $0x2b0] sm:$0xff]
    %v102 = vld [vmem:[%s0 + $0x2b8] sm:$0xff]
    %v103 = vld [vmem:[%s0 + $0x2c0] sm:$0xff]
    %v104 = vld [vmem:[%s0 + $0x2c8] sm:$0xff]
    %v105 = vld [vmem:[%s0 + $0x2d0] sm:$0xff]
    %v106 = vld [vmem:[%s0 + $0x2d8] sm:$0xff]
    %v107 = vld [vmem:[%s0 + $0x2e0] sm:$0xff]
    %v108 = vld [vmem:[%s0 + $0x2e8] sm:$0xff]
    %v109 = vld [vmem:[%s0 + $0x2f0] sm:$0xff]
    %v110 = vld [vmem:[%s0 + $0x2f8] sm:$0xff]
    %v111 = vld [vmem:[%s0 + $0x300] sm:$0xff]
    %v112 = vld [vmem:[%s0 + $0x308] sm:$0xff]
    %v113 = vld [vmem:[%s0 + $0x310] sm:$0xff]
    %v114 = vld [vmem:[%s0 + $0x318] sm:$0xff]
    %v115 = vld [vmem:[%s0 + $0x320] sm:$0xff]
    %v116 = vld [vmem:[%s0 + $0x328] sm:$0xff]
    %v117 = vld [vmem:[%s0 + $0x330] sm:$0xff]
    %v118 = vld [vmem:[%s0 + $0x338] sm:$0xff]
    %v119 = vld [vmem:[%s0 + $0x340] sm:$0xff]
    %v120 = vld [vmem:[%s0 + $0x348] sm:$0xff]
    %v121 = vld [vmem:[%s0 + $0x350] sm:$0xff]
    %v122 = vld [vmem:[%s0 + $0x358] sm:$0xff]
    %v123 = vld [vmem:[%s0 + $0x360] sm:$0xff]
    %v124 = vld [vmem:[%s0 + $0x368] sm:$0xff]
    %v125 = vld [vmem:[%s0 + $0x370] sm:$0xff]
    %v126 = vld [vmem:[%s0 + $0x378] sm:$0xff]
    %v127 = vld [vmem:[%s0 + $0x380] sm:$0xff]
    %v128 = vld [vmem:[%s0 + $0x388] sm:$0xff]
    %v129 = vld [vmem:[%s0 + $0x390] sm:$0xff]
    %v130 = vld [vmem:[%s0 + $0x398] sm:$0xff]
    %v131 = vld [vmem:[%s0 + $0x3a0] sm:$0xff]
    %v132 = vld [vmem:[%s0 + $0x3a8] sm:$0xff]
    %v133 = vld [vmem:[%s0 + $0x3b0] sm:$0xff]
    %v134 = vld [vmem:[%s0 + $0x3b8] sm:$0xff]
    %v135 = vld [vmem:[%s0 + $0x3c0] sm:$0xff]
    %v136 = vld [vmem:[%s0 + $0x3c8] sm:$0xff]
    %v137 = vld [vmem:[%s0 + $0x3d0] sm:$0xff]
    %v138 = vld [vmem:[%s0 + $0x3d8] sm:$0xff]
    %v139 = vld [vmem:[%s0 + $0x3e0] sm:$0xff]
    %v140 = vld [vmem:[%s0 + $0x3e8] sm:$0xff]
    %v141 = vld [vmem:[%s0 + $0x3f0] sm:$0xff]
    %v142 = vld [vmem:[%s0 + $0x3f8] sm:$0xff]
    %v143 = vld [vmem:[%s0 + $0x400] sm:$0xff]
    %v144 = vld [vmem:[%s0 + $0x408] sm:$0xff]
    %v145 = vld [vmem:[%s0 + $0x410] sm:$0xff]
    %v146 = vld [vmem:[%s0 + $0x418] sm:$0xff]
    %v147 = vld [vmem:[%s0 + $0x420] sm:$0xff]
    %v148 = vld [vmem:[%s0 + $0x428] sm:$0xff]
    %v149 = vld [vmem:[%s0 + $0x430] sm:$0xff]
    %v150 = vld [vmem:[%s0 + $0x438] sm:$0xff]
    %v151 = vld [vmem:[%s0 + $0x440] sm:$0xff]
    %v152 = vld [vmem:[%s0 + $0x448] sm:$0xff]
    %v153 = vld [vmem:[%s0 + $0x450] sm:$0xff]
    %v154 = vld [vmem:[%s0 + $0x458] sm:$0xff]
    %v155 = vld [vmem:[%s0 + $0x460] sm:$0xff]
    %v156 = vld [vmem:[%s0 + $0x468] sm:$0xff]
    %v157 = vld [vmem:[%s0 + $0x470] sm:$0xff]
    %v158 = vld [vmem:[%s0 + $0x478] sm:$0xff]
    %v159 = vld [vmem:[%s0 + $0x480] sm:$0xff]
    %v160 = vld [vmem:[%s0 + $0x488] sm:$0xff]
    %v161 = vld [vmem:[%s0 + $0x490] sm:$0xff]
    %v162 = vld [vmem:[%s0 + $0x498] sm:$0xff]
    %v163 = vld [vmem:[%s0 + $0x4a0] sm:$0xff]
    %v164 = vld [vmem:[%s0 + $0x4a8] sm:$0xff]
    %v165 = vld [vmem:[%s0 + $0x4b0] sm:$0xff]
    %v166 = vld [vmem:[%s0 + $0x4b8] sm:$0xff]
    %v167 = vld [vmem:[%s0 + $0x4c0] sm:$0xff]
    %v168 = vld [vmem:[%s0 + $0x4c8] sm:$0xff]
    %v169 = vld [vmem:[%s0 + $0x4d0] sm:$0xff]
    %v170 = vld [vmem:[%s0 + $0x4d8] sm:$0xff]
    %v171 = vld [vmem:[%s0 + $0x4e0] sm:$0xff]
    %v172 = vld [vmem:[%s0 + $0x4e8] sm:$0xff]
    %v173 = vld [vmem:[%s0 + $0x4f0] sm:$0xff]
    %v174 = vld [vmem:[%s0 + $0x4f8] sm:$0xff]
    %v175 = vld [vmem:[%s0 + $0x500] sm:$0xff]
    %v176 = vld [vmem:[%s0 + $0x508] sm:$0xff]
    %v177 = vld [vmem:[%s0 + $0x510] sm:$0xff]
    %v178 = vld [vmem:[%s0 + $0x518] sm:$0xff]
    %v179 = vld [vmem:[%s0 + $0x520] sm:$0xff]
    %v180 = vld [vmem:[%s0 + $0x528] sm:$0xff]
    %v181 = vld [vmem:[%s0 + $0x530] sm:$0xff]
    %v182 = vld [vmem:[%s0 + $0x538] sm:$0xff]
    %v183 = vld [vmem:[%s0 + $0x540] sm:$0xff]
    %v184 = vld [vmem:[%s0 + $0x548] sm:$0xff]
    %v185 = vld [vmem:[%s0 + $0x550] sm:$0xff]
    %v186 = vld [vmem:[%s0 + $0x558] sm:$0xff]
    %v187 = vld [vmem:[%s0 + $0x560] sm:$0xff]
    %v188 = vld [vmem:[%s0 + $0x568] sm:$0xff]
    %v189 = vld [vmem:[%s0 + $0x570] sm:$0xff]
    %v190 = vld [vmem:[%s0 + $0x578] sm:$0xff]
    %v191 = vld [vmem:[%s0 + $0x580] sm:$0xff]
    %v192 = vld [vmem:[%s0 + $0x588] sm:$0xff]
    %v193 = vld [vmem:[%s0 + $0x590] sm:$0xff]
    %v194 = vld [vmem:[%s0 + $0x598] sm:$0xff]
    %v195 = vld [vmem:[%s0 + $0x5a0] sm:$0xff]
    %v196 = vld [vmem:[%s0 + $0x5a8] sm:$0xff]
    %v197 = vld [vmem:[%s0 + $0x5b0] sm:$0xff]
    %v198 = vld [vmem:[%s0 + $0x5b8] sm:$0xff]
    %v199 = vld [vmem:[%s0 + $0x5c0] sm:$0xff]
    %v200 = vld [vmem:[%s0 + $0x5c8] sm:$0xff]
    %v201 = vld [vmem:[%s0 + $0x5d0] sm:$0xff]
    %v202 = vld [vmem:[%s0 + $0x5d8] sm:$0xff]
    %v203 = vld [vmem:[%s0 + $0x5e0] sm:$0xff]
    %v204 = vld [vmem:[%s0 + $0x5e8] sm:$0xff]
    %v205 = vld [vmem:[%s0 + $0x5f0] sm:$0xff]
    %v206 = vld [vmem:[%s0 + $0x5f8] sm:$0xff]
    %v207 = vld [vmem:[%s0 + $0x600] sm:$0xff]
    %v208 = vld [vmem:[%s0 + $0x608] sm:$0xff]
    %v209 = vld [vmem:[%s0 + $0x610] sm:$0xff]
    %v210 = vld [vmem:[%s0 + $0x618] sm:$0xff]
    %v211 = vld [vmem:[%s0 + $0x620] sm:$0xff]
    %v212 = vld [vmem:[%s0 + $0x628] sm:$0xff]
    %v213 = vld [vmem:[%s0 + $0x630] sm:$0xff]
    %v214 = vld [vmem:[%s0 + $0x638] sm:$0xff]
    %v215 = vld [vmem:[%s0 + $0x640] sm:$0xff]
    %v216 = vld [vmem:[%s0 + $0x648] sm:$0xff]
    %v217 = vld [vmem:[%s0 + $0x650] sm:$0xff]
    %v218 = vld [vmem:[%s0 + $0x658] sm:$0xff]
    %v219 = vld [vmem:[%s0 + $0x660] sm:$0xff]
    %v220 = vld [vmem:[%s0 + $0x668] sm:$0xff]
    %v221 = vld [vmem:[%s0 + $0x670] sm:$0xff]
    %v222 = vld [vmem:[%s0 + $0x678] sm:$0xff]
    %v223 = vld [vmem:[%s0 + $0x680] sm:$0xff]
    %v224 = vld [vmem:[%s0 + $0x688] sm:$0xff]
    %v225 = vld [vmem:[%s0 + $0x690] sm:$0xff]
    %v226 = vld [vmem:[%s0 + $0x698] sm:$0xff]
    %v227 = vld [vmem:[%s0 + $0x6a0] sm:$0xff]
    %v228 = vld [vmem:[%s0 + $0x6a8] sm:$0xff]
    %v229 = vld [vmem:[%s0 + $0x6b0] sm:$0xff]
    %v230 = vld [vmem:[%s0 + $0x6b8] sm:$0xff]
    %v231 = vld [vmem:[%s0 + $0x6c0] sm:$0xff]
    %v232 = vld [vmem:[%s0 + $0x6c8] sm:$0xff]
    %v233 = vld [vmem:[%s0 + $0x6d0] sm:$0xff]
    %v234 = vld [vmem:[%s0 + $0x6d8] sm:$0xff]
    %v235 = vld [vmem:[%s0 + $0x6e0] sm:$0xff]
    %v236 = vld [vmem:[%s0 + $0x6e8] sm:$0xff]
    %v237 = vld [vmem:[%s0 + $0x6f0] sm:$0xff]
    %v238 = vld [vmem:[%s0 + $0x6f8] sm:$0xff]
    %v239 = vld [vmem:[%s0 + $0x700] sm:$0xff]
    %v240 = vld [vmem:[%s0 + $0x708] sm:$0xff]
    %v241 = vld [vmem:[%s0 + $0x710] sm:$0xff]
    %v242 = vld [vmem:[%s0 + $0x718] sm:$0xff]
    %v243 = vld [vmem:[%s0 + $0x720] sm:$0xff]
    %v244 = vld [vmem:[%s0 + $0x728] sm:$0xff]
    %v245 = vld [vmem:[%s0 + $0x730] sm:$0xff]
    %v246 = vld [vmem:[%s0 + $0x738] sm:$0xff]
    %v247 = vld [vmem:[%s0 + $0x740] sm:$0xff]
    %v248 = vld [vmem:[%s0 + $0x748] sm:$0xff]
    %v249 = vld [vmem:[%s0 + $0x750] sm:$0xff]
    %v250 = vld [vmem:[%s0 + $0x758] sm:$0xff]
    %v251 = vld [vmem:[%s0 + $0x760] sm:$0xff]
    %v252 = vld [vmem:[%s0 + $0x768] sm:$0xff]
    %v253 = vld [vmem:[%s0 + $0x770] sm:$0xff]
    %v254 = vld [vmem:[%s0 + $0x778] sm:$0xff]
    %v255 = vld [vmem:[%s0 + $0x780] sm:$0xff]
    %v256 = vld [vmem:[%s0 + $0x788] sm:$0xff]
    %v257 = vld [vmem:[%s0 + $0x790] sm:$0xff]
    %v258 = vld [vmem:[%s0 + $0x798] sm:$0xff]
    %v259 = vld [vmem:[%s0 + $0x7a0] sm:$0xff]
    %v260 = vld [vmem:[%s0 + $0x7a8] sm:$0xff]
    %v261 = vld [vmem:[%s0 + $0x7b0] sm:$0xff]
    %v262 = vld [vmem:[%s0 + $0x7b8] sm:$0xff]
    %v263 = vld [vmem:[%s0 + $0x7c0] sm:$0xff]
    %v264 = vld [vmem:[%s0 + $0x7c8] sm:$0xff]
    %v265 = vld [vmem:[%s0 + $0x7d0] sm:$0xff]
    %v266 = vld [vmem:[%s0 + $0x7d8] sm:$0xff]
    %v267 = vld [vmem:[%s1] sm:$0xff]
    %v268 = vld [vmem:[%s1 + $0x8] sm:$0xff]
    %v269 = vld [vmem:[%s1 + $0x10] sm:$0xff]
    %v270 = vld [vmem:[%s1 + $0x18] sm:$0xff]
    %v271 = vld [vmem:[%s1 + $0x20] sm:$0xff]
    %v272 = vld [vmem:[%s1 + $0x28] sm:$0xff]
    %v273 = vld [vmem:[%s1 + $0x30] sm:$0xff]
    %v274 = vld [vmem:[%s1 + $0x38] sm:$0xff]
    %v275 = vld [vmem:[%s1 + $0x40] sm:$0xff]
    %v276 = vld [vmem:[%s1 + $0x48] sm:$0xff]
    %v277 = vld [vmem:[%s1 + $0x50] sm:$0xff]
    %v278 = vld [vmem:[%s1 + $0x58] sm:$0xff]
    %v279 = vld [vmem:[%s1 + $0x60] sm:$0xff]
    %v280 = vld [vmem:[%s1 + $0x68] sm:$0xff]
    %v281 = vld [vmem:[%s1 + $0x70] sm:$0xff]
    %v282 = vld [vmem:[%s1 + $0x78] sm:$0xff]
    %v283 = vld [vmem:[%s1 + $0x80] sm:$0xff]
    %v284 = vld [vmem:[%s1 + $0x88] sm:$0xff]
    %v285 = vld [vmem:[%s1 + $0x90] sm:$0xff]
    %v286 = vld [vmem:[%s1 + $0x98] sm:$0xff]
    %v287 = vld [vmem:[%s1 + $0xa0] sm:$0xff]
    %v288 = vld [vmem:[%s1 + $0xa8] sm:$0xff]
    %v289 = vld [vmem:[%s1 + $0xb0] sm:$0xff]
    %v290 = vld [vmem:[%s1 + $0xb8] sm:$0xff]
    %v291 = vld [vmem:[%s1 + $0xc0] sm:$0xff]
    %v292 = vld [vmem:[%s1 + $0xc8] sm:$0xff]
    %v293 = vld [vmem:[%s1 + $0xd0] sm:$0xff]
    %v294 = vld [vmem:[%s1 + $0xd8] sm:$0xff]
    %v295 = vld [vmem:[%s1 + $0xe0] sm:$0xff]
    %v296 = vld [vmem:[%s1 + $0xe8] sm:$0xff]
    %v297 = vld [vmem:[%s1 + $0xf0] sm:$0xff]
    %v298 = vld [vmem:[%s1 + $0xf8] sm:$0xff]
    %v299 = vld [vmem:[%s1 + $0x100] sm:$0xff]
    %v300 = vld [vmem:[%s1 + $0x108] sm:$0xff]
    %v301 = vld [vmem:[%s1 + $0x110] sm:$0xff]
    %v302 = vld [vmem:[%s1 + $0x118] sm:$0xff]
    %v303 = vld [vmem:[%s1 + $0x120] sm:$0xff]
    %v304 = vld [vmem:[%s1 + $0x128] sm:$0xff]
    %v305 = vld [vmem:[%s1 + $0x130] sm:$0xff]
    %v306 = vld [vmem:[%s1 + $0x138] sm:$0xff]
    %v307 = vld [vmem:[%s1 + $0x140] sm:$0xff]
    %v308 = vld [vmem:[%s1 + $0x148] sm:$0xff]
    %v309 = vld [vmem:[%s1 + $0x150] sm:$0xff]
    %v310 = vld [vmem:[%s1 + $0x158] sm:$0xff]
    %v311 = vld [vmem:[%s1 + $0x160] sm:$0xff]
    %v312 = vld [vmem:[%s1 + $0x168] sm:$0xff]
    %v313 = vld [vmem:[%s1 + $0x170] sm:$0xff]
    %v314 = vld [vmem:[%s1 + $0x178] sm:$0xff]
    %v315 = vld [vmem:[%s2] sm:$0x1]
    %v317 = vlaneseq
    %v318 = vshrl.u32 %v317, 7
    %v319 = vsub.s32 0, %v318
    %v320 = vrot.slane %v315, %v319
    %322 = vmatprep.subr.mxu0 0.0
    %323 = vmatpush1.msra.mxu0 %v282
    %324 = vmatprep.subr.mxu0 0.0
    %325 = vmatpush1.msra.mxu0 %v281
    %326 = vmatprep.subr.mxu0 0.0
    %327 = vmatpush1.msra.mxu0 %v280
    %328 = vmatprep.subr.mxu0 0.0
    %329 = vmatpush1.msra.mxu0 %v279
    %330 = vmatprep.subr.mxu0 0.0
    %331 = vmatpush1.msra.mxu0 %v278
    %332 = vmatprep.subr.mxu0 0.0
    %333 = vmatpush1.msra.mxu0 %v277
    %334 = vmatprep.subr.mxu0 0.0
    %335 = vmatpush1.msra.mxu0 %v276
    %336 = vmatprep.subr.mxu0 0.0
    %337 = vmatpush1.msra.mxu0 %v275
    %338 = vmatprep.subr.mxu0 0.0
    %339 = vmatpush1.msra.mxu0 %v274
    %340 = vmatprep.subr.mxu0 0.0
    %341 = vmatpush1.msra.mxu0 %v273
    %342 = vmatprep.subr.mxu0 0.0
    %343 = vmatpush1.msra.mxu0 %v272
    %344 = vmatprep.subr.mxu0 0.0
    %345 = vmatpush1.msra.mxu0 %v271
    %346 = vmatprep.subr.mxu0 0.0
    %347 = vmatpush1.msra.mxu0 %v270
    %348 = vmatprep.subr.mxu0 0.0
    %349 = vmatpush1.msra.mxu0 %v269
    %350 = vmatprep.subr.mxu0 0.0
    %351 = vmatpush1.msra.mxu0 %v268
    %352 = vmatprep.subr.mxu0 0.0
    %353 = vmatpush1.msra.mxu0 %v267
    %354 = vmatprep.subr.mxu0 0.0
    %355 = vmatpush2.msra.mxu0 %v298
    %356 = vmatprep.subr.mxu0 0.0
    %357 = vmatpush2.msra.mxu0 %v297
    %358 = vmatprep.subr.mxu0 0.0
    %359 = vmatpush2.msra.mxu0 %v296
    %360 = vmatprep.subr.mxu0 0.0
    %361 = vmatpush2.msra.mxu0 %v295
    %362 = vmatprep.subr.mxu0 0.0
    %363 = vmatpush2.msra.mxu0 %v294
    %364 = vmatprep.subr.mxu0 0.0
    %365 = vmatpush2.msra.mxu0 %v293
    %366 = vmatprep.subr.mxu0 0.0
    %367 = vmatpush2.msra.mxu0 %v292
    %368 = vmatprep.subr.mxu0 0.0
    %369 = vmatpush2.msra.mxu0 %v291
    %370 = vmatprep.subr.mxu0 0.0
    %371 = vmatpush2.msra.mxu0 %v290
    %372 = vmatprep.subr.mxu0 0.0
    %373 = vmatpush2.msra.mxu0 %v289
    %374 = vmatprep.subr.mxu0 0.0
    %375 = vmatpush2.msra.mxu0 %v288
    %376 = vmatprep.subr.mxu0 0.0
    %377 = vmatpush2.msra.mxu0 %v287
    %378 = vmatprep.subr.mxu0 0.0
    %379 = vmatpush2.msra.mxu0 %v286
    %380 = vmatprep.subr.mxu0 0.0
    %381 = vmatpush2.msra.mxu0 %v285
    %382 = vmatprep.subr.mxu0 0.0
    %383 = vmatpush2.msra.mxu0 %v284
    %384 = vmatprep.subr.mxu0 0.0
    %385 = vmatpush2.msra.mxu0 %v283
    %386 = vmatprep.mubr.f32.mxu0 %v16
    %387 = vmatmul.mubr.f32.gmra.mxu0 %v15
    %v388 = vpop.f32.mrf.mxu0
    %v389 = vadd.f32 %v320, %v388
    %v390 = vpop.f32.mrf.mxu0
    %391 = vmatprep.mubr.f32.mxu0 %v19
    %392 = vmatmul.mubr.f32.gmra.mxu0 %v18
    %v393 = vpop.f32.mrf.mxu0
    %v394 = vadd.f32 %v320, %v393
    %v395 = vpop.f32.mrf.mxu0
    %396 = vmatprep.mubr.f32.mxu0 %v22
    %397 = vmatmul.mubr.f32.gmra.mxu0 %v21
    %v398 = vpop.f32.mrf.mxu0
    %v399 = vadd.f32 %v320, %v398
    %v400 = vpop.f32.mrf.mxu0
    %401 = vmatprep.mubr.f32.mxu0 %v25
    %402 = vmatmul.mubr.f32.gmra.mxu0 %v24
    %v403 = vpop.f32.mrf.mxu0
    %v404 = vadd.f32 %v320, %v403
    %v405 = vpop.f32.mrf.mxu0
    %406 = vmatprep.mubr.f32.mxu0 %v28
    %407 = vmatmul.mubr.f32.gmra.mxu0 %v27
    %v408 = vpop.f32.mrf.mxu0
    %v409 = vadd.f32 %v320, %v408
    %v410 = vpop.f32.mrf.mxu0
    %411 = vmatprep.mubr.f32.mxu0 %v31
    %412 = vmatmul.mubr.f32.gmra.mxu0 %v30
    %v413 = vpop.f32.mrf.mxu0
    %v414 = vadd.f32 %v320, %v413
    %v415 = vpop.f32.mrf.mxu0
    %416 = vmatprep.mubr.f32.mxu0 %v34
    %417 = vmatmul.mubr.f32.gmra.mxu0 %v33
    %v418 = vpop.f32.mrf.mxu0
    %v419 = vadd.f32 %v320, %v418
    %v420 = vpop.f32.mrf.mxu0
    %421 = vmatprep.mubr.f32.mxu0 %v37
    %422 = vmatmul.mubr.f32.gmra.mxu0 %v36
    %v423 = vpop.f32.mrf.mxu0
    %v424 = vadd.f32 %v320, %v423
    %v425 = vpop.f32.mrf.mxu0
    %426 = vmatprep.mubr.f32.mxu0 %v40
    %427 = vmatmul.mubr.f32.gmra.mxu0 %v39
    %v428 = vpop.f32.mrf.mxu0
    %v429 = vadd.f32 %v320, %v428
    %v430 = vpop.f32.mrf.mxu0
    %431 = vmatprep.mubr.f32.mxu0 %v43
    %432 = vmatmul.mubr.f32.gmra.mxu0 %v42
    %v433 = vpop.f32.mrf.mxu0
    %v434 = vadd.f32 %v320, %v433
    %v435 = vpop.f32.mrf.mxu0
    %436 = vmatprep.mubr.f32.mxu0 %v46
    %437 = vmatmul.mubr.f32.gmra.mxu0 %v45
    %v438 = vpop.f32.mrf.mxu0
    %v439 = vadd.f32 %v320, %v438
    %v440 = vpop.f32.mrf.mxu0
    %441 = vmatprep.mubr.f32.mxu0 %v49
    %442 = vmatmul.mubr.f32.gmra.mxu0 %v48
    %v443 = vpop.f32.mrf.mxu0
    %v444 = vadd.f32 %v320, %v443
    %v445 = vpop.f32.mrf.mxu0
    %446 = vmatprep.mubr.f32.mxu0 %v52
    %447 = vmatmul.mubr.f32.gmra.mxu0 %v51
    %v448 = vpop.f32.mrf.mxu0
    %v449 = vadd.f32 %v320, %v448
    %v450 = vpop.f32.mrf.mxu0
    %451 = vmatprep.mubr.f32.mxu0 %v55
    %452 = vmatmul.mubr.f32.gmra.mxu0 %v54
    %v453 = vpop.f32.mrf.mxu0
    %v454 = vadd.f32 %v320, %v453
    %v455 = vpop.f32.mrf.mxu0
    %456 = vmatprep.mubr.f32.mxu0 %v58
    %457 = vmatmul.mubr.f32.gmra.mxu0 %v57
    %v458 = vpop.f32.mrf.mxu0
    %v459 = vadd.f32 %v320, %v458
    %v460 = vpop.f32.mrf.mxu0
    %461 = vmatprep.mubr.f32.mxu0 %v61
    %462 = vmatmul.mubr.f32.gmra.mxu0 %v60
    %v463 = vpop.f32.mrf.mxu0
    %v464 = vadd.f32 %v320, %v463
    %v465 = vpop.f32.mrf.mxu0
    %466 = vmatprep.mubr.f32.mxu0 %v64
    %467 = vmatmul.mubr.f32.gmra.mxu0 %v63
    %v468 = vpop.f32.mrf.mxu0
    %v469 = vadd.f32 %v320, %v468
    %v470 = vpop.f32.mrf.mxu0
    %471 = vmatprep.mubr.f32.mxu0 %v67
    %472 = vmatmul.mubr.f32.gmra.mxu0 %v66
    %v473 = vpop.f32.mrf.mxu0
    %v474 = vadd.f32 %v320, %v473
    %v475 = vpop.f32.mrf.mxu0
    %476 = vmatprep.mubr.f32.mxu0 %v70
    %477 = vmatmul.mubr.f32.gmra.mxu0 %v69
    %v478 = vpop.f32.mrf.mxu0
    %v479 = vadd.f32 %v320, %v478
    %v480 = vpop.f32.mrf.mxu0
    %481 = vmatprep.mubr.f32.mxu0 %v73
    %482 = vmatmul.mubr.f32.gmra.mxu0 %v72
    %v483 = vpop.f32.mrf.mxu0
    %v484 = vadd.f32 %v320, %v483
    %v485 = vpop.f32.mrf.mxu0
    %486 = vmatprep.mubr.f32.mxu0 %v76
    %487 = vmatmul.mubr.f32.gmra.mxu0 %v75
    %v488 = vpop.f32.mrf.mxu0
    %v489 = vadd.f32 %v320, %v488
    %v490 = vpop.f32.mrf.mxu0
    %491 = vmatprep.mubr.f32.mxu0 %v79
    %492 = vmatmul.mubr.f32.gmra.mxu0 %v78
    %v493 = vpop.f32.mrf.mxu0
    %v494 = vadd.f32 %v320, %v493
    %v495 = vpop.f32.mrf.mxu0
    %496 = vmatprep.mubr.f32.mxu0 %v82
    %497 = vmatmul.mubr.f32.gmra.mxu0 %v81
    %v498 = vpop.f32.mrf.mxu0
    %v499 = vadd.f32 %v320, %v498
    %v500 = vpop.f32.mrf.mxu0
    %501 = vmatprep.mubr.f32.mxu0 %v85
    %502 = vmatmul.mubr.f32.gmra.mxu0 %v84
    %v503 = vpop.f32.mrf.mxu0
    %v504 = vadd.f32 %v320, %v503
    %v505 = vpop.f32.mrf.mxu0
    %506 = vmatprep.mubr.f32.mxu0 %v88
    %507 = vmatmul.mubr.f32.gmra.mxu0 %v87
    %v508 = vpop.f32.mrf.mxu0
    %v509 = vadd.f32 %v320, %v508
    %v510 = vpop.f32.mrf.mxu0
    %511 = vmatprep.mubr.f32.mxu0 %v91
    %512 = vmatmul.mubr.f32.gmra.mxu0 %v90
    %v513 = vpop.f32.mrf.mxu0
    %v514 = vadd.f32 %v320, %v513
    %v515 = vpop.f32.mrf.mxu0
    %516 = vmatprep.mubr.f32.mxu0 %v94
    %517 = vmatmul.mubr.f32.gmra.mxu0 %v93
    %v518 = vpop.f32.mrf.mxu0
    %v519 = vadd.f32 %v320, %v518
    %v520 = vpop.f32.mrf.mxu0
    %521 = vmatprep.mubr.f32.mxu0 %v97
    %522 = vmatmul.mubr.f32.gmra.mxu0 %v96
    %v523 = vpop.f32.mrf.mxu0
    %v524 = vadd.f32 %v320, %v523
    %v525 = vpop.f32.mrf.mxu0
    %526 = vmatprep.mubr.f32.mxu0 %v100
    %527 = vmatmul.mubr.f32.gmra.mxu0 %v99
    %v528 = vpop.f32.mrf.mxu0
    %v529 = vadd.f32 %v320, %v528
    %v530 = vpop.f32.mrf.mxu0
    %531 = vmatprep.mubr.f32.mxu0 %v103
    %532 = vmatmul.mubr.f32.gmra.mxu0 %v102
    %v533 = vpop.f32.mrf.mxu0
    %v534 = vadd.f32 %v320, %v533
    %v535 = vpop.f32.mrf.mxu0
    %536 = vmatprep.mubr.f32.mxu0 %v106
    %537 = vmatmul.mubr.f32.gmra.mxu0 %v105
    %v538 = vpop.f32.mrf.mxu0
    %v539 = vadd.f32 %v320, %v538
    %v540 = vpop.f32.mrf.mxu0
    %541 = vmatprep.mubr.f32.mxu0 %v109
    %542 = vmatmul.mubr.f32.gmra.mxu0 %v108
    %v543 = vpop.f32.mrf.mxu0
    %v544 = vadd.f32 %v320, %v543
    %v545 = vpop.f32.mrf.mxu0
    %546 = vmatprep.mubr.f32.mxu0 %v112
    %547 = vmatmul.mubr.f32.gmra.mxu0 %v111
    %v548 = vpop.f32.mrf.mxu0
    %v549 = vadd.f32 %v320, %v548
    %v550 = vpop.f32.mrf.mxu0
    %551 = vmatprep.mubr.f32.mxu0 %v115
    %552 = vmatmul.mubr.f32.gmra.mxu0 %v114
    %v553 = vpop.f32.mrf.mxu0
    %v554 = vadd.f32 %v320, %v553
    %v555 = vpop.f32.mrf.mxu0
    %556 = vmatprep.mubr.f32.mxu0 %v118
    %557 = vmatmul.mubr.f32.gmra.mxu0 %v117
    %v558 = vpop.f32.mrf.mxu0
    %v559 = vadd.f32 %v320, %v558
    %v560 = vpop.f32.mrf.mxu0
    %561 = vmatprep.mubr.f32.mxu0 %v121
    %562 = vmatmul.mubr.f32.gmra.mxu0 %v120
    %v563 = vpop.f32.mrf.mxu0
    %v564 = vadd.f32 %v320, %v563
    %v565 = vpop.f32.mrf.mxu0
    %566 = vmatprep.mubr.f32.mxu0 %v124
    %567 = vmatmul.mubr.f32.gmra.mxu0 %v123
    %v568 = vpop.f32.mrf.mxu0
    %v569 = vadd.f32 %v320, %v568
    %v570 = vpop.f32.mrf.mxu0
    %571 = vmatprep.mubr.f32.mxu0 %v127
    %572 = vmatmul.mubr.f32.gmra.mxu0 %v126
    %v573 = vpop.f32.mrf.mxu0
    %v574 = vadd.f32 %v320, %v573
    %v575 = vpop.f32.mrf.mxu0
    %576 = vmatprep.mubr.f32.mxu0 %v130
    %577 = vmatmul.mubr.f32.gmra.mxu0 %v129
    %v578 = vpop.f32.mrf.mxu0
    %v579 = vadd.f32 %v320, %v578
    %v580 = vpop.f32.mrf.mxu0
    %581 = vmatprep.mubr.f32.mxu0 %v133
    %582 = vmatmul.mubr.f32.gmra.mxu0 %v132
    %v583 = vpop.f32.mrf.mxu0
    %v584 = vadd.f32 %v320, %v583
    %v585 = vpop.f32.mrf.mxu0
    %586 = vmatprep.mubr.f32.mxu0 %v136
    %587 = vmatmul.mubr.f32.gmra.mxu0 %v135
    %v588 = vpop.f32.mrf.mxu0
    %v589 = vadd.f32 %v320, %v588
    %v590 = vpop.f32.mrf.mxu0
    %591 = vmatprep.mubr.f32.mxu0 %v139
    %592 = vmatmul.mubr.f32.gmra.mxu0 %v138
    %v593 = vpop.f32.mrf.mxu0
    %v594 = vadd.f32 %v320, %v593
    %v595 = vpop.f32.mrf.mxu0
    %596 = vmatprep.mubr.f32.mxu0 %v142
    %597 = vmatmul.mubr.f32.gmra.mxu0 %v141
    %v598 = vpop.f32.mrf.mxu0
    %v599 = vadd.f32 %v320, %v598
    %v600 = vpop.f32.mrf.mxu0
    %601 = vmatprep.mubr.f32.mxu0 %v145
    %602 = vmatmul.mubr.f32.gmra.mxu0 %v144
    %v603 = vpop.f32.mrf.mxu0
    %v604 = vadd.f32 %v320, %v603
    %v605 = vpop.f32.mrf.mxu0
    %606 = vmatprep.mubr.f32.mxu0 %v148
    %607 = vmatmul.mubr.f32.gmra.mxu0 %v147
    %v608 = vpop.f32.mrf.mxu0
    %v609 = vadd.f32 %v320, %v608
    %v610 = vpop.f32.mrf.mxu0
    %611 = vmatprep.mubr.f32.mxu0 %v151
    %612 = vmatmul.mubr.f32.gmra.mxu0 %v150
    %v613 = vpop.f32.mrf.mxu0
    %v614 = vadd.f32 %v320, %v613
    %v615 = vpop.f32.mrf.mxu0
    %616 = vmatprep.mubr.f32.mxu0 %v154
    %617 = vmatmul.mubr.f32.gmra.mxu0 %v153
    %v618 = vpop.f32.mrf.mxu0
    %v619 = vadd.f32 %v320, %v618
    %v620 = vpop.f32.mrf.mxu0
    %621 = vmatprep.mubr.f32.mxu0 %v157
    %622 = vmatmul.mubr.f32.gmra.mxu0 %v156
    %v623 = vpop.f32.mrf.mxu0
    %v624 = vadd.f32 %v320, %v623
    %v625 = vpop.f32.mrf.mxu0
    %626 = vmatprep.mubr.f32.mxu0 %v160
    %627 = vmatmul.mubr.f32.gmra.mxu0 %v159
    %v628 = vpop.f32.mrf.mxu0
    %v629 = vadd.f32 %v320, %v628
    %v630 = vpop.f32.mrf.mxu0
    %631 = vmatprep.mubr.f32.mxu0 %v163
    %632 = vmatmul.mubr.f32.gmra.mxu0 %v162
    %v633 = vpop.f32.mrf.mxu0
    %v634 = vadd.f32 %v320, %v633
    %v635 = vpop.f32.mrf.mxu0
    %636 = vmatprep.mubr.f32.mxu0 %v166
    %637 = vmatmul.mubr.f32.gmra.mxu0 %v165
    %v638 = vpop.f32.mrf.mxu0
    %v639 = vadd.f32 %v320, %v638
    %v640 = vpop.f32.mrf.mxu0
    %641 = vmatprep.mubr.f32.mxu0 %v169
    %642 = vmatmul.mubr.f32.gmra.mxu0 %v168
    %v643 = vpop.f32.mrf.mxu0
    %v644 = vadd.f32 %v320, %v643
    %v645 = vpop.f32.mrf.mxu0
    %646 = vmatprep.mubr.f32.mxu0 %v172
    %647 = vmatmul.mubr.f32.gmra.mxu0 %v171
    %v648 = vpop.f32.mrf.mxu0
    %v649 = vadd.f32 %v320, %v648
    %v650 = vpop.f32.mrf.mxu0
    %651 = vmatprep.mubr.f32.mxu0 %v175
    %652 = vmatmul.mubr.f32.gmra.mxu0 %v174
    %v653 = vpop.f32.mrf.mxu0
    %v654 = vadd.f32 %v320, %v653
    %v655 = vpop.f32.mrf.mxu0
    %656 = vmatprep.mubr.f32.mxu0 %v178
    %657 = vmatmul.mubr.f32.gmra.mxu0 %v177
    %v658 = vpop.f32.mrf.mxu0
    %v659 = vadd.f32 %v320, %v658
    %v660 = vpop.f32.mrf.mxu0
    %661 = vmatprep.mubr.f32.mxu0 %v181
    %662 = vmatmul.mubr.f32.gmra.mxu0 %v180
    %v663 = vpop.f32.mrf.mxu0
    %v664 = vadd.f32 %v320, %v663
    %v665 = vpop.f32.mrf.mxu0
    %666 = vmatprep.mubr.f32.mxu0 %v184
    %667 = vmatmul.mubr.f32.gmra.mxu0 %v183
    %v668 = vpop.f32.mrf.mxu0
    %v669 = vadd.f32 %v320, %v668
    %v670 = vpop.f32.mrf.mxu0
    %671 = vmatprep.mubr.f32.mxu0 %v187
    %672 = vmatmul.mubr.f32.gmra.mxu0 %v186
    %v673 = vpop.f32.mrf.mxu0
    %v674 = vadd.f32 %v320, %v673
    %v675 = vpop.f32.mrf.mxu0
    %676 = vmatprep.mubr.f32.mxu0 %v190
    %677 = vmatmul.mubr.f32.gmra.mxu0 %v189
    %v678 = vpop.f32.mrf.mxu0
    %v679 = vadd.f32 %v320, %v678
    %v680 = vpop.f32.mrf.mxu0
    %681 = vmatprep.mubr.f32.mxu0 %v193
    %682 = vmatmul.mubr.f32.gmra.mxu0 %v192
    %v683 = vpop.f32.mrf.mxu0
    %v684 = vadd.f32 %v320, %v683
    %v685 = vpop.f32.mrf.mxu0
    %686 = vmatprep.mubr.f32.mxu0 %v196
    %687 = vmatmul.mubr.f32.gmra.mxu0 %v195
    %v688 = vpop.f32.mrf.mxu0
    %v689 = vadd.f32 %v320, %v688
    %v690 = vpop.f32.mrf.mxu0
    %691 = vmatprep.mubr.f32.mxu0 %v199
    %692 = vmatmul.mubr.f32.gmra.mxu0 %v198
    %v693 = vpop.f32.mrf.mxu0
    %v694 = vadd.f32 %v320, %v693
    %v695 = vpop.f32.mrf.mxu0
    %696 = vmatprep.mubr.f32.mxu0 %v202
    %697 = vmatmul.mubr.f32.gmra.mxu0 %v201
    %v698 = vpop.f32.mrf.mxu0
    %v699 = vadd.f32 %v320, %v698
    %v700 = vpop.f32.mrf.mxu0
    %701 = vmatprep.mubr.f32.mxu0 %v205
    %702 = vmatmul.mubr.f32.gmra.mxu0 %v204
    %v703 = vpop.f32.mrf.mxu0
    %v704 = vadd.f32 %v320, %v703
    %v705 = vpop.f32.mrf.mxu0
    %706 = vmatprep.mubr.f32.mxu0 %v208
    %707 = vmatmul.mubr.f32.gmra.mxu0 %v207
    %v708 = vpop.f32.mrf.mxu0
    %v709 = vadd.f32 %v320, %v708
    %v710 = vpop.f32.mrf.mxu0
    %711 = vmatprep.mubr.f32.mxu0 %v211
    %712 = vmatmul.mubr.f32.gmra.mxu0 %v210
    %v713 = vpop.f32.mrf.mxu0
    %v714 = vadd.f32 %v320, %v713
    %v715 = vpop.f32.mrf.mxu0
    %716 = vmatprep.mubr.f32.mxu0 %v214
    %717 = vmatmul.mubr.f32.gmra.mxu0 %v213
    %v718 = vpop.f32.mrf.mxu0
    %v719 = vadd.f32 %v320, %v718
    %v720 = vpop.f32.mrf.mxu0
    %721 = vmatprep.mubr.f32.mxu0 %v217
    %722 = vmatmul.mubr.f32.gmra.mxu0 %v216
    %v723 = vpop.f32.mrf.mxu0
    %v724 = vadd.f32 %v320, %v723
    %v725 = vpop.f32.mrf.mxu0
    %726 = vmatprep.mubr.f32.mxu0 %v220
    %727 = vmatmul.mubr.f32.gmra.mxu0 %v219
    %v728 = vpop.f32.mrf.mxu0
    %v729 = vadd.f32 %v320, %v728
    %v730 = vpop.f32.mrf.mxu0
    %731 = vmatprep.mubr.f32.mxu0 %v223
    %732 = vmatmul.mubr.f32.gmra.mxu0 %v222
    %v733 = vpop.f32.mrf.mxu0
    %v734 = vadd.f32 %v320, %v733
    %v735 = vpop.f32.mrf.mxu0
    %736 = vmatprep.mubr.f32.mxu0 %v226
    %737 = vmatmul.mubr.f32.gmra.mxu0 %v225
    %v738 = vpop.f32.mrf.mxu0
    %v739 = vadd.f32 %v320, %v738
    %v740 = vpop.f32.mrf.mxu0
    %741 = vmatprep.mubr.f32.mxu0 %v229
    %742 = vmatmul.mubr.f32.gmra.mxu0 %v228
    %v743 = vpop.f32.mrf.mxu0
    %v744 = vadd.f32 %v320, %v743
    %v745 = vpop.f32.mrf.mxu0
    %746 = vmatprep.mubr.f32.mxu0 %v232
    %747 = vmatmul.mubr.f32.gmra.mxu0 %v231
    %v748 = vpop.f32.mrf.mxu0
    %v749 = vadd.f32 %v320, %v748
    %v750 = vpop.f32.mrf.mxu0
    %751 = vmatprep.mubr.f32.mxu0 %v235
    %752 = vmatmul.mubr.f32.gmra.mxu0 %v234
    %v753 = vpop.f32.mrf.mxu0
    %v754 = vadd.f32 %v320, %v753
    %v755 = vpop.f32.mrf.mxu0
    %756 = vmatprep.mubr.f32.mxu0 %v238
    %757 = vmatmul.mubr.f32.gmra.mxu0 %v237
    %v758 = vpop.f32.mrf.mxu0
    %v759 = vadd.f32 %v320, %v758
    %v760 = vpop.f32.mrf.mxu0
    %761 = vmatprep.mubr.f32.mxu0 %v241
    %762 = vmatmul.mubr.f32.gmra.mxu0 %v240
    %v763 = vpop.f32.mrf.mxu0
    %v764 = vadd.f32 %v320, %v763
    %v765 = vpop.f32.mrf.mxu0
    %766 = vmatprep.mubr.f32.mxu0 %v244
    %767 = vmatmul.mubr.f32.gmra.mxu0 %v243
    %v768 = vpop.f32.mrf.mxu0
    %v769 = vadd.f32 %v320, %v768
    %v770 = vpop.f32.mrf.mxu0
    %771 = vmatprep.mubr.f32.mxu0 %v247
    %772 = vmatmul.mubr.f32.gmra.mxu0 %v246
    %v773 = vpop.f32.mrf.mxu0
    %v774 = vadd.f32 %v320, %v773
    %v775 = vpop.f32.mrf.mxu0
    %776 = vmatprep.mubr.f32.mxu0 %v250
    %777 = vmatmul.mubr.f32.gmra.mxu0 %v249
    %v778 = vpop.f32.mrf.mxu0
    %v779 = vadd.f32 %v320, %v778
    %v780 = vpop.f32.mrf.mxu0
    %781 = vmatprep.mubr.f32.mxu0 %v253
    %782 = vmatmul.mubr.f32.gmra.mxu0 %v252
    %v783 = vpop.f32.mrf.mxu0
    %v784 = vadd.f32 %v320, %v783
    %v785 = vpop.f32.mrf.mxu0
    %786 = vmatprep.mubr.f32.mxu0 %v256
    %787 = vmatmul.mubr.f32.gmra.mxu0 %v255
    %v788 = vpop.f32.mrf.mxu0
    %v789 = vadd.f32 %v320, %v788
    %v790 = vpop.f32.mrf.mxu0
    %791 = vmatprep.mubr.f32.mxu0 %v259
    %792 = vmatmul.mubr.f32.gmra.mxu0 %v258
    %v793 = vpop.f32.mrf.mxu0
    %v794 = vadd.f32 %v320, %v793
    %v795 = vpop.f32.mrf.mxu0
    %796 = vmatprep.mubr.f32.mxu0 %v262
    %797 = vmatmul.mubr.f32.gmra.mxu0 %v261
    %v798 = vpop.f32.mrf.mxu0
    %v799 = vadd.f32 %v320, %v798
    %v800 = vpop.f32.mrf.mxu0
    %801 = vmatprep.mubr.f32.mxu0 %v265
    %802 = vmatmul.mubr.f32.gmra.mxu0 %v264
    %v803 = vpop.f32.mrf.mxu0
    %v804 = vadd.f32 %v320, %v803
    %v805 = vpop.f32.mrf.mxu0
    %806 = vdwg.mxu0
    %807 = vmatprep.subr.mxu0 0.0
    %808 = vmatpush1.msra.mxu0 %v314
    %809 = vmatprep.subr.mxu0 0.0
    %810 = vmatpush1.msra.mxu0 %v313
    %811 = vmatprep.subr.mxu0 0.0
    %812 = vmatpush1.msra.mxu0 %v312
    %813 = vmatprep.subr.mxu0 0.0
    %814 = vmatpush1.msra.mxu0 %v311
    %815 = vmatprep.subr.mxu0 0.0
    %816 = vmatpush1.msra.mxu0 %v310
    %817 = vmatprep.subr.mxu0 0.0
    %818 = vmatpush1.msra.mxu0 %v309
    %819 = vmatprep.subr.mxu0 0.0
    %820 = vmatpush1.msra.mxu0 %v308
    %821 = vmatprep.subr.mxu0 0.0
    %822 = vmatpush1.msra.mxu0 %v307
    %823 = vmatprep.subr.mxu0 0.0
    %824 = vmatpush1.msra.mxu0 %v306
    %825 = vmatprep.subr.mxu0 0.0
    %826 = vmatpush1.msra.mxu0 %v305
    %827 = vmatprep.subr.mxu0 0.0
    %828 = vmatpush1.msra.mxu0 %v304
    %829 = vmatprep.subr.mxu0 0.0
    %830 = vmatpush1.msra.mxu0 %v303
    %831 = vmatprep.subr.mxu0 0.0
    %832 = vmatpush1.msra.mxu0 %v302
    %833 = vmatprep.subr.mxu0 0.0
    %834 = vmatpush1.msra.mxu0 %v301
    %835 = vmatprep.subr.mxu0 0.0
    %836 = vmatpush1.msra.mxu0 %v300
    %837 = vmatprep.subr.mxu0 0.0
    %838 = vmatpush1.msra.mxu0 %v299
    %839 = vmatprep.subr.mxu0 0.0
    %840 = vmatpush2.msra.mxu0 0.0
    %841 = vmatprep.subr.mxu0 0.0
    %842 = vmatpush2.msra.mxu0 0.0
    %843 = vmatprep.subr.mxu0 0.0
    %844 = vmatpush2.msra.mxu0 0.0
    %845 = vmatprep.subr.mxu0 0.0
    %846 = vmatpush2.msra.mxu0 0.0
    %847 = vmatprep.subr.mxu0 0.0
    %848 = vmatpush2.msra.mxu0 0.0
    %849 = vmatprep.subr.mxu0 0.0
    %850 = vmatpush2.msra.mxu0 0.0
    %851 = vmatprep.subr.mxu0 0.0
    %852 = vmatpush2.msra.mxu0 0.0
    %853 = vmatprep.subr.mxu0 0.0
    %854 = vmatpush2.msra.mxu0 0.0
    %855 = vmatprep.subr.mxu0 0.0
    %856 = vmatpush2.msra.mxu0 0.0
    %857 = vmatprep.subr.mxu0 0.0
    %858 = vmatpush2.msra.mxu0 0.0
    %859 = vmatprep.subr.mxu0 0.0
    %860 = vmatpush2.msra.mxu0 0.0
    %861 = vmatprep.subr.mxu0 0.0
    %862 = vmatpush2.msra.mxu0 0.0
    %863 = vmatprep.subr.mxu0 0.0
    %864 = vmatpush2.msra.mxu0 0.0
    %865 = vmatprep.subr.mxu0 0.0
    %866 = vmatpush2.msra.mxu0 0.0
    %867 = vmatprep.subr.mxu0 0.0
    %868 = vmatpush2.msra.mxu0 0.0
    %869 = vmatprep.subr.mxu0 0.0
    %870 = vmatpush2.msra.mxu0 0.0
    %871 = vmatprep.mubr.f32.mxu0 0.0
    %872 = vmatmul.mubr.f32.gmra.mxu0 %v17
    %v873 = vpop.f32.mrf.mxu0
    %v874 = vadd.f32 %v389, %v873
    %v875 = vpop.f32.mrf.mxu0
    %876 = vmatprep.mubr.f32.mxu0 0.0
    %877 = vmatmul.mubr.f32.gmra.mxu0 %v20
    %v878 = vpop.f32.mrf.mxu0
    %v879 = vadd.f32 %v394, %v878
    %v880 = vpop.f32.mrf.mxu0
    %881 = vmatprep.mubr.f32.mxu0 0.0
    %882 = vmatmul.mubr.f32.gmra.mxu0 %v23
    %v883 = vpop.f32.mrf.mxu0
    %v884 = vadd.f32 %v399, %v883
    %v885 = vpop.f32.mrf.mxu0
    %886 = vmatprep.mubr.f32.mxu0 0.0
    %887 = vmatmul.mubr.f32.gmra.mxu0 %v26
    %v888 = vpop.f32.mrf.mxu0
    %v889 = vadd.f32 %v404, %v888
    %v890 = vpop.f32.mrf.mxu0
    %891 = vmatprep.mubr.f32.mxu0 0.0
    %892 = vmatmul.mubr.f32.gmra.mxu0 %v29
    %v893 = vpop.f32.mrf.mxu0
    %v894 = vadd.f32 %v409, %v893
    %v895 = vpop.f32.mrf.mxu0
    %896 = vmatprep.mubr.f32.mxu0 0.0
    %897 = vmatmul.mubr.f32.gmra.mxu0 %v32
    %v898 = vpop.f32.mrf.mxu0
    %v899 = vadd.f32 %v414, %v898
    %v900 = vpop.f32.mrf.mxu0
    %901 = vmatprep.mubr.f32.mxu0 0.0
    %902 = vmatmul.mubr.f32.gmra.mxu0 %v35
    %v903 = vpop.f32.mrf.mxu0
    %v904 = vadd.f32 %v419, %v903
    %v905 = vpop.f32.mrf.mxu0
    %906 = vmatprep.mubr.f32.mxu0 0.0
    %907 = vmatmul.mubr.f32.gmra.mxu0 %v38
    %v908 = vpop.f32.mrf.mxu0
    %v909 = vadd.f32 %v424, %v908
    %v910 = vpop.f32.mrf.mxu0
    %911 = vmatprep.mubr.f32.mxu0 0.0
    %912 = vmatmul.mubr.f32.gmra.mxu0 %v41
    %v913 = vpop.f32.mrf.mxu0
    %v914 = vadd.f32 %v429, %v913
    %v915 = vpop.f32.mrf.mxu0
    %916 = vmatprep.mubr.f32.mxu0 0.0
    %917 = vmatmul.mubr.f32.gmra.mxu0 %v44
    %v918 = vpop.f32.mrf.mxu0
    %v919 = vadd.f32 %v434, %v918
    %v920 = vpop.f32.mrf.mxu0
    %921 = vmatprep.mubr.f32.mxu0 0.0
    %922 = vmatmul.mubr.f32.gmra.mxu0 %v47
    %v923 = vpop.f32.mrf.mxu0
    %v924 = vadd.f32 %v439, %v923
    %v925 = vpop.f32.mrf.mxu0
    %926 = vmatprep.mubr.f32.mxu0 0.0
    %927 = vmatmul.mubr.f32.gmra.mxu0 %v50
    %v928 = vpop.f32.mrf.mxu0
    %v929 = vadd.f32 %v444, %v928
    %v930 = vpop.f32.mrf.mxu0
    %931 = vmatprep.mubr.f32.mxu0 0.0
    %932 = vmatmul.mubr.f32.gmra.mxu0 %v53
    %v933 = vpop.f32.mrf.mxu0
    %v934 = vadd.f32 %v449, %v933
    %v935 = vpop.f32.mrf.mxu0
    %936 = vmatprep.mubr.f32.mxu0 0.0
    %937 = vmatmul.mubr.f32.gmra.mxu0 %v56
    %v938 = vpop.f32.mrf.mxu0
    %v939 = vadd.f32 %v454, %v938
    %v940 = vpop.f32.mrf.mxu0
    %941 = vmatprep.mubr.f32.mxu0 0.0
    %942 = vmatmul.mubr.f32.gmra.mxu0 %v59
    %v943 = vpop.f32.mrf.mxu0
    %v944 = vadd.f32 %v459, %v943
    %v945 = vpop.f32.mrf.mxu0
    %946 = vmatprep.mubr.f32.mxu0 0.0
    %947 = vmatmul.mubr.f32.gmra.mxu0 %v62
    %v948 = vpop.f32.mrf.mxu0
    %v949 = vadd.f32 %v464, %v948
    %v950 = vpop.f32.mrf.mxu0
    %951 = vmatprep.mubr.f32.mxu0 0.0
    %952 = vmatmul.mubr.f32.gmra.mxu0 %v65
    %v953 = vpop.f32.mrf.mxu0
    %v954 = vadd.f32 %v469, %v953
    %v955 = vpop.f32.mrf.mxu0
    %956 = vmatprep.mubr.f32.mxu0 0.0
    %957 = vmatmul.mubr.f32.gmra.mxu0 %v68
    %v958 = vpop.f32.mrf.mxu0
    %v959 = vadd.f32 %v474, %v958
    %v960 = vpop.f32.mrf.mxu0
    %961 = vmatprep.mubr.f32.mxu0 0.0
    %962 = vmatmul.mubr.f32.gmra.mxu0 %v71
    %v963 = vpop.f32.mrf.mxu0
    %v964 = vadd.f32 %v479, %v963
    %v965 = vpop.f32.mrf.mxu0
    %966 = vmatprep.mubr.f32.mxu0 0.0
    %967 = vmatmul.mubr.f32.gmra.mxu0 %v74
    %v968 = vpop.f32.mrf.mxu0
    %v969 = vadd.f32 %v484, %v968
    %v970 = vpop.f32.mrf.mxu0
    %971 = vmatprep.mubr.f32.mxu0 0.0
    %972 = vmatmul.mubr.f32.gmra.mxu0 %v77
    %v973 = vpop.f32.mrf.mxu0
    %v974 = vadd.f32 %v489, %v973
    %v975 = vpop.f32.mrf.mxu0
    %976 = vmatprep.mubr.f32.mxu0 0.0
    %977 = vmatmul.mubr.f32.gmra.mxu0 %v80
    %v978 = vpop.f32.mrf.mxu0
    %v979 = vadd.f32 %v494, %v978
    %v980 = vpop.f32.mrf.mxu0
    %981 = vmatprep.mubr.f32.mxu0 0.0
    %982 = vmatmul.mubr.f32.gmra.mxu0 %v83
    %v983 = vpop.f32.mrf.mxu0
    %v984 = vadd.f32 %v499, %v983
    %v985 = vpop.f32.mrf.mxu0
    %986 = vmatprep.mubr.f32.mxu0 0.0
    %987 = vmatmul.mubr.f32.gmra.mxu0 %v86
    %v988 = vpop.f32.mrf.mxu0
    %v989 = vadd.f32 %v504, %v988
    %v990 = vpop.f32.mrf.mxu0
    %991 = vmatprep.mubr.f32.mxu0 0.0
    %992 = vmatmul.mubr.f32.gmra.mxu0 %v89
    %v993 = vpop.f32.mrf.mxu0
    %v994 = vadd.f32 %v509, %v993
    %v995 = vpop.f32.mrf.mxu0
    %996 = vmatprep.mubr.f32.mxu0 0.0
    %997 = vmatmul.mubr.f32.gmra.mxu0 %v92
    %v998 = vpop.f32.mrf.mxu0
    %v999 = vadd.f32 %v514, %v998
    %v1000 = vpop.f32.mrf.mxu0
    %1001 = vmatprep.mubr.f32.mxu0 0.0
    %1002 = vmatmul.mubr.f32.gmra.mxu0 %v95
    %v1003 = vpop.f32.mrf.mxu0
    %v1004 = vadd.f32 %v519, %v1003
    %v1005 = vpop.f32.mrf.mxu0
    %1006 = vmatprep.mubr.f32.mxu0 0.0
    %1007 = vmatmul.mubr.f32.gmra.mxu0 %v98
    %v1008 = vpop.f32.mrf.mxu0
    %v1009 = vadd.f32 %v524, %v1008
    %v1010 = vpop.f32.mrf.mxu0
    %1011 = vmatprep.mubr.f32.mxu0 0.0
    %1012 = vmatmul.mubr.f32.gmra.mxu0 %v101
    %v1013 = vpop.f32.mrf.mxu0
    %v1014 = vadd.f32 %v529, %v1013
    %v1015 = vpop.f32.mrf.mxu0
    %1016 = vmatprep.mubr.f32.mxu0 0.0
    %1017 = vmatmul.mubr.f32.gmra.mxu0 %v104
    %v1018 = vpop.f32.mrf.mxu0
    %v1019 = vadd.f32 %v534, %v1018
    %v1020 = vpop.f32.mrf.mxu0
    %1021 = vmatprep.mubr.f32.mxu0 0.0
    %1022 = vmatmul.mubr.f32.gmra.mxu0 %v107
    %v1023 = vpop.f32.mrf.mxu0
    %v1024 = vadd.f32 %v539, %v1023
    %v1025 = vpop.f32.mrf.mxu0
    %1026 = vmatprep.mubr.f32.mxu0 0.0
    %1027 = vmatmul.mubr.f32.gmra.mxu0 %v110
    %v1028 = vpop.f32.mrf.mxu0
    %v1029 = vadd.f32 %v544, %v1028
    %v1030 = vpop.f32.mrf.mxu0
    %1031 = vmatprep.mubr.f32.mxu0 0.0
    %1032 = vmatmul.mubr.f32.gmra.mxu0 %v113
    %v1033 = vpop.f32.mrf.mxu0
    %v1034 = vadd.f32 %v549, %v1033
    %v1035 = vpop.f32.mrf.mxu0
    %1036 = vmatprep.mubr.f32.mxu0 0.0
    %1037 = vmatmul.mubr.f32.gmra.mxu0 %v116
    %v1038 = vpop.f32.mrf.mxu0
    %v1039 = vadd.f32 %v554, %v1038
    %v1040 = vpop.f32.mrf.mxu0
    %1041 = vmatprep.mubr.f32.mxu0 0.0
    %1042 = vmatmul.mubr.f32.gmra.mxu0 %v119
    %v1043 = vpop.f32.mrf.mxu0
    %v1044 = vadd.f32 %v559, %v1043
    %v1045 = vpop.f32.mrf.mxu0
    %1046 = vmatprep.mubr.f32.mxu0 0.0
    %1047 = vmatmul.mubr.f32.gmra.mxu0 %v122
    %v1048 = vpop.f32.mrf.mxu0
    %v1049 = vadd.f32 %v564, %v1048
    %v1050 = vpop.f32.mrf.mxu0
    %1051 = vmatprep.mubr.f32.mxu0 0.0
    %1052 = vmatmul.mubr.f32.gmra.mxu0 %v125
    %v1053 = vpop.f32.mrf.mxu0
    %v1054 = vadd.f32 %v569, %v1053
    %v1055 = vpop.f32.mrf.mxu0
    %1056 = vmatprep.mubr.f32.mxu0 0.0
    %1057 = vmatmul.mubr.f32.gmra.mxu0 %v128
    %v1058 = vpop.f32.mrf.mxu0
    %v1059 = vadd.f32 %v574, %v1058
    %v1060 = vpop.f32.mrf.mxu0
    %1061 = vmatprep.mubr.f32.mxu0 0.0
    %1062 = vmatmul.mubr.f32.gmra.mxu0 %v131
    %v1063 = vpop.f32.mrf.mxu0
    %v1064 = vadd.f32 %v579, %v1063
    %v1065 = vpop.f32.mrf.mxu0
    %1066 = vmatprep.mubr.f32.mxu0 0.0
    %1067 = vmatmul.mubr.f32.gmra.mxu0 %v134
    %v1068 = vpop.f32.mrf.mxu0
    %v1069 = vadd.f32 %v584, %v1068
    %v1070 = vpop.f32.mrf.mxu0
    %1071 = vmatprep.mubr.f32.mxu0 0.0
    %1072 = vmatmul.mubr.f32.gmra.mxu0 %v137
    %v1073 = vpop.f32.mrf.mxu0
    %v1074 = vadd.f32 %v589, %v1073
    %v1075 = vpop.f32.mrf.mxu0
    %1076 = vmatprep.mubr.f32.mxu0 0.0
    %1077 = vmatmul.mubr.f32.gmra.mxu0 %v140
    %v1078 = vpop.f32.mrf.mxu0
    %v1079 = vadd.f32 %v594, %v1078
    %v1080 = vpop.f32.mrf.mxu0
    %1081 = vmatprep.mubr.f32.mxu0 0.0
    %1082 = vmatmul.mubr.f32.gmra.mxu0 %v143
    %v1083 = vpop.f32.mrf.mxu0
    %v1084 = vadd.f32 %v599, %v1083
    %v1085 = vpop.f32.mrf.mxu0
    %1086 = vmatprep.mubr.f32.mxu0 0.0
    %1087 = vmatmul.mubr.f32.gmra.mxu0 %v146
    %v1088 = vpop.f32.mrf.mxu0
    %v1089 = vadd.f32 %v604, %v1088
    %v1090 = vpop.f32.mrf.mxu0
    %1091 = vmatprep.mubr.f32.mxu0 0.0
    %1092 = vmatmul.mubr.f32.gmra.mxu0 %v149
    %v1093 = vpop.f32.mrf.mxu0
    %v1094 = vadd.f32 %v609, %v1093
    %v1095 = vpop.f32.mrf.mxu0
    %1096 = vmatprep.mubr.f32.mxu0 0.0
    %1097 = vmatmul.mubr.f32.gmra.mxu0 %v152
    %v1098 = vpop.f32.mrf.mxu0
    %v1099 = vadd.f32 %v614, %v1098
    %v1100 = vpop.f32.mrf.mxu0
    %1101 = vmatprep.mubr.f32.mxu0 0.0
    %1102 = vmatmul.mubr.f32.gmra.mxu0 %v155
    %v1103 = vpop.f32.mrf.mxu0
    %v1104 = vadd.f32 %v619, %v1103
    %v1105 = vpop.f32.mrf.mxu0
    %1106 = vmatprep.mubr.f32.mxu0 0.0
    %1107 = vmatmul.mubr.f32.gmra.mxu0 %v158
    %v1108 = vpop.f32.mrf.mxu0
    %v1109 = vadd.f32 %v624, %v1108
    %v1110 = vpop.f32.mrf.mxu0
    %1111 = vmatprep.mubr.f32.mxu0 0.0
    %1112 = vmatmul.mubr.f32.gmra.mxu0 %v161
    %v1113 = vpop.f32.mrf.mxu0
    %v1114 = vadd.f32 %v629, %v1113
    %v1115 = vpop.f32.mrf.mxu0
    %1116 = vmatprep.mubr.f32.mxu0 0.0
    %1117 = vmatmul.mubr.f32.gmra.mxu0 %v164
    %v1118 = vpop.f32.mrf.mxu0
    %v1119 = vadd.f32 %v634, %v1118
    %v1120 = vpop.f32.mrf.mxu0
    %1121 = vmatprep.mubr.f32.mxu0 0.0
    %1122 = vmatmul.mubr.f32.gmra.mxu0 %v167
    %v1123 = vpop.f32.mrf.mxu0
    %v1124 = vadd.f32 %v639, %v1123
    %v1125 = vpop.f32.mrf.mxu0
    %1126 = vmatprep.mubr.f32.mxu0 0.0
    %1127 = vmatmul.mubr.f32.gmra.mxu0 %v170
    %v1128 = vpop.f32.mrf.mxu0
    %v1129 = vadd.f32 %v644, %v1128
    %v1130 = vpop.f32.mrf.mxu0
    %1131 = vmatprep.mubr.f32.mxu0 0.0
    %1132 = vmatmul.mubr.f32.gmra.mxu0 %v173
    %v1133 = vpop.f32.mrf.mxu0
    %v1134 = vadd.f32 %v649, %v1133
    %v1135 = vpop.f32.mrf.mxu0
    %1136 = vmatprep.mubr.f32.mxu0 0.0
    %1137 = vmatmul.mubr.f32.gmra.mxu0 %v176
    %v1138 = vpop.f32.mrf.mxu0
    %v1139 = vadd.f32 %v654, %v1138
    %v1140 = vpop.f32.mrf.mxu0
    %1141 = vmatprep.mubr.f32.mxu0 0.0
    %1142 = vmatmul.mubr.f32.gmra.mxu0 %v179
    %v1143 = vpop.f32.mrf.mxu0
    %v1144 = vadd.f32 %v659, %v1143
    %v1145 = vpop.f32.mrf.mxu0
    %1146 = vmatprep.mubr.f32.mxu0 0.0
    %1147 = vmatmul.mubr.f32.gmra.mxu0 %v182
    %v1148 = vpop.f32.mrf.mxu0
    %v1149 = vadd.f32 %v664, %v1148
    %v1150 = vpop.f32.mrf.mxu0
    %1151 = vmatprep.mubr.f32.mxu0 0.0
    %1152 = vmatmul.mubr.f32.gmra.mxu0 %v185
    %v1153 = vpop.f32.mrf.mxu0
    %v1154 = vadd.f32 %v669, %v1153
    %v1155 = vpop.f32.mrf.mxu0
    %1156 = vmatprep.mubr.f32.mxu0 0.0
    %1157 = vmatmul.mubr.f32.gmra.mxu0 %v188
    %v1158 = vpop.f32.mrf.mxu0
    %v1159 = vadd.f32 %v674, %v1158
    %v1160 = vpop.f32.mrf.mxu0
    %1161 = vmatprep.mubr.f32.mxu0 0.0
    %1162 = vmatmul.mubr.f32.gmra.mxu0 %v191
    %v1163 = vpop.f32.mrf.mxu0
    %v1164 = vadd.f32 %v679, %v1163
    %v1165 = vpop.f32.mrf.mxu0
    %1166 = vmatprep.mubr.f32.mxu0 0.0
    %1167 = vmatmul.mubr.f32.gmra.mxu0 %v194
    %v1168 = vpop.f32.mrf.mxu0
    %v1169 = vadd.f32 %v684, %v1168
    %v1170 = vpop.f32.mrf.mxu0
    %1171 = vmatprep.mubr.f32.mxu0 0.0
    %1172 = vmatmul.mubr.f32.gmra.mxu0 %v197
    %v1173 = vpop.f32.mrf.mxu0
    %v1174 = vadd.f32 %v689, %v1173
    %v1175 = vpop.f32.mrf.mxu0
    %1176 = vmatprep.mubr.f32.mxu0 0.0
    %1177 = vmatmul.mubr.f32.gmra.mxu0 %v200
    %v1178 = vpop.f32.mrf.mxu0
    %v1179 = vadd.f32 %v694, %v1178
    %v1180 = vpop.f32.mrf.mxu0
    %1181 = vmatprep.mubr.f32.mxu0 0.0
    %1182 = vmatmul.mubr.f32.gmra.mxu0 %v203
    %v1183 = vpop.f32.mrf.mxu0
    %v1184 = vadd.f32 %v699, %v1183
    %v1185 = vpop.f32.mrf.mxu0
    %1186 = vmatprep.mubr.f32.mxu0 0.0
    %1187 = vmatmul.mubr.f32.gmra.mxu0 %v206
    %v1188 = vpop.f32.mrf.mxu0
    %v1189 = vadd.f32 %v704, %v1188
    %v1190 = vpop.f32.mrf.mxu0
    %1191 = vmatprep.mubr.f32.mxu0 0.0
    %1192 = vmatmul.mubr.f32.gmra.mxu0 %v209
    %v1193 = vpop.f32.mrf.mxu0
    %v1194 = vadd.f32 %v709, %v1193
    %v1195 = vpop.f32.mrf.mxu0
    %1196 = vmatprep.mubr.f32.mxu0 0.0
    %1197 = vmatmul.mubr.f32.gmra.mxu0 %v212
    %v1198 = vpop.f32.mrf.mxu0
    %v1199 = vadd.f32 %v714, %v1198
    %v1200 = vpop.f32.mrf.mxu0
    %1201 = vmatprep.mubr.f32.mxu0 0.0
    %1202 = vmatmul.mubr.f32.gmra.mxu0 %v215
    %v1203 = vpop.f32.mrf.mxu0
    %v1204 = vadd.f32 %v719, %v1203
    %v1205 = vpop.f32.mrf.mxu0
    %1206 = vmatprep.mubr.f32.mxu0 0.0
    %1207 = vmatmul.mubr.f32.gmra.mxu0 %v218
    %v1208 = vpop.f32.mrf.mxu0
    %v1209 = vadd.f32 %v724, %v1208
    %v1210 = vpop.f32.mrf.mxu0
    %1211 = vmatprep.mubr.f32.mxu0 0.0
    %1212 = vmatmul.mubr.f32.gmra.mxu0 %v221
    %v1213 = vpop.f32.mrf.mxu0
    %v1214 = vadd.f32 %v729, %v1213
    %v1215 = vpop.f32.mrf.mxu0
    %1216 = vmatprep.mubr.f32.mxu0 0.0
    %1217 = vmatmul.mubr.f32.gmra.mxu0 %v224
    %v1218 = vpop.f32.mrf.mxu0
    %v1219 = vadd.f32 %v734, %v1218
    %v1220 = vpop.f32.mrf.mxu0
    %1221 = vmatprep.mubr.f32.mxu0 0.0
    %1222 = vmatmul.mubr.f32.gmra.mxu0 %v227
    %v1223 = vpop.f32.mrf.mxu0
    %v1224 = vadd.f32 %v739, %v1223
    %v1225 = vpop.f32.mrf.mxu0
    %1226 = vmatprep.mubr.f32.mxu0 0.0
    %1227 = vmatmul.mubr.f32.gmra.mxu0 %v230
    %v1228 = vpop.f32.mrf.mxu0
    %v1229 = vadd.f32 %v744, %v1228
    %v1230 = vpop.f32.mrf.mxu0
    %1231 = vmatprep.mubr.f32.mxu0 0.0
    %1232 = vmatmul.mubr.f32.gmra.mxu0 %v233
    %v1233 = vpop.f32.mrf.mxu0
    %v1234 = vadd.f32 %v749, %v1233
    %v1235 = vpop.f32.mrf.mxu0
    %1236 = vmatprep.mubr.f32.mxu0 0.0
    %1237 = vmatmul.mubr.f32.gmra.mxu0 %v236
    %v1238 = vpop.f32.mrf.mxu0
    %v1239 = vadd.f32 %v754, %v1238
    %v1240 = vpop.f32.mrf.mxu0
    %1241 = vmatprep.mubr.f32.mxu0 0.0
    %1242 = vmatmul.mubr.f32.gmra.mxu0 %v239
    %v1243 = vpop.f32.mrf.mxu0
    %v1244 = vadd.f32 %v759, %v1243
    %v1245 = vpop.f32.mrf.mxu0
    %1246 = vmatprep.mubr.f32.mxu0 0.0
    %1247 = vmatmul.mubr.f32.gmra.mxu0 %v242
    %v1248 = vpop.f32.mrf.mxu0
    %v1249 = vadd.f32 %v764, %v1248
    %v1250 = vpop.f32.mrf.mxu0
    %1251 = vmatprep.mubr.f32.mxu0 0.0
    %1252 = vmatmul.mubr.f32.gmra.mxu0 %v245
    %v1253 = vpop.f32.mrf.mxu0
    %v1254 = vadd.f32 %v769, %v1253
    %v1255 = vpop.f32.mrf.mxu0
    %1256 = vmatprep.mubr.f32.mxu0 0.0
    %1257 = vmatmul.mubr.f32.gmra.mxu0 %v248
    %v1258 = vpop.f32.mrf.mxu0
    %v1259 = vadd.f32 %v774, %v1258
    %v1260 = vpop.f32.mrf.mxu0
    %1261 = vmatprep.mubr.f32.mxu0 0.0
    %1262 = vmatmul.mubr.f32.gmra.mxu0 %v251
    %v1263 = vpop.f32.mrf.mxu0
    %v1264 = vadd.f32 %v779, %v1263
    %v1265 = vpop.f32.mrf.mxu0
    %1266 = vmatprep.mubr.f32.mxu0 0.0
    %1267 = vmatmul.mubr.f32.gmra.mxu0 %v254
    %v1268 = vpop.f32.mrf.mxu0
    %v1269 = vadd.f32 %v784, %v1268
    %v1270 = vpop.f32.mrf.mxu0
    %1271 = vmatprep.mubr.f32.mxu0 0.0
    %1272 = vmatmul.mubr.f32.gmra.mxu0 %v257
    %v1273 = vpop.f32.mrf.mxu0
    %v1274 = vadd.f32 %v789, %v1273
    %v1275 = vpop.f32.mrf.mxu0
    %1276 = vmatprep.mubr.f32.mxu0 0.0
    %1277 = vmatmul.mubr.f32.gmra.mxu0 %v260
    %v1278 = vpop.f32.mrf.mxu0
    %v1279 = vadd.f32 %v794, %v1278
    %v1280 = vpop.f32.mrf.mxu0
    %1281 = vmatprep.mubr.f32.mxu0 0.0
    %1282 = vmatmul.mubr.f32.gmra.mxu0 %v263
    %v1283 = vpop.f32.mrf.mxu0
    %v1284 = vadd.f32 %v799, %v1283
    %v1285 = vpop.f32.mrf.mxu0
    %1286 = vmatprep.mubr.f32.mxu0 0.0
    %1287 = vmatmul.mubr.f32.gmra.mxu0 %v266
    %v1288 = vpop.f32.mrf.mxu0
    %v1289 = vadd.f32 %v804, %v1288
    %v1290 = vpop.f32.mrf.mxu0
    %1291 = vdwg.mxu0
    %v1292 = vtanh.pop %v874
    %v1293 = vtanh.pop %v879
    %v1294 = vtanh.pop %v884
    %v1295 = vtanh.pop %v889
    %v1296 = vtanh.pop %v894
    %v1297 = vtanh.pop %v899
    %v1298 = vtanh.pop %v904
    %v1299 = vtanh.pop %v909
    %v1300 = vtanh.pop %v914
    %v1301 = vtanh.pop %v919
    %v1302 = vtanh.pop %v924
    %v1303 = vtanh.pop %v929
    %v1304 = vtanh.pop %v934
    %v1305 = vtanh.pop %v939
    %v1306 = vtanh.pop %v944
    %v1307 = vtanh.pop %v949
    %v1308 = vtanh.pop %v954
    %v1309 = vtanh.pop %v959
    %v1310 = vtanh.pop %v964
    %v1311 = vtanh.pop %v969
    %v1312 = vtanh.pop %v974
    %v1313 = vtanh.pop %v979
    %v1314 = vtanh.pop %v984
    %v1315 = vtanh.pop %v989
    %v1316 = vtanh.pop %v994
    %v1317 = vtanh.pop %v999
    %v1318 = vtanh.pop %v1004
    %v1319 = vtanh.pop %v1009
    %v1320 = vtanh.pop %v1014
    %v1321 = vtanh.pop %v1019
    %v1322 = vtanh.pop %v1024
    %v1323 = vtanh.pop %v1029
    %v1324 = vtanh.pop %v1034
    %v1325 = vtanh.pop %v1039
    %v1326 = vtanh.pop %v1044
    %v1327 = vtanh.pop %v1049
    %v1328 = vtanh.pop %v1054
    %v1329 = vtanh.pop %v1059
    %v1330 = vtanh.pop %v1064
    %v1331 = vtanh.pop %v1069
    %v1332 = vtanh.pop %v1074
    %v1333 = vtanh.pop %v1079
    %v1334 = vtanh.pop %v1084
    %v1335 = vtanh.pop %v1089
    %v1336 = vtanh.pop %v1094
    %v1337 = vtanh.pop %v1099
    %v1338 = vtanh.pop %v1104
    %v1339 = vtanh.pop %v1109
    %v1340 = vtanh.pop %v1114
    %v1341 = vtanh.pop %v1119
    %v1342 = vtanh.pop %v1124
    %v1343 = vtanh.pop %v1129
    %v1344 = vtanh.pop %v1134
    %v1345 = vtanh.pop %v1139
    %v1346 = vtanh.pop %v1144
    %v1347 = vtanh.pop %v1149
    %v1348 = vtanh.pop %v1154
    %v1349 = vtanh.pop %v1159
    %v1350 = vtanh.pop %v1164
    %v1351 = vtanh.pop %v1169
    %v1352 = vtanh.pop %v1174
    %v1353 = vtanh.pop %v1179
    %v1354 = vtanh.pop %v1184
    %v1355 = vtanh.pop %v1189
    %v1356 = vtanh.pop %v1194
    %v1357 = vtanh.pop %v1199
    %v1358 = vtanh.pop %v1204
    %v1359 = vtanh.pop %v1209
    %v1360 = vtanh.pop %v1214
    %v1361 = vtanh.pop %v1219
    %v1362 = vtanh.pop %v1224
    %v1363 = vtanh.pop %v1229
    %v1364 = vtanh.pop %v1234
    %v1365 = vtanh.pop %v1239
    %v1366 = vtanh.pop %v1244
    %v1367 = vtanh.pop %v1249
    %v1368 = vtanh.pop %v1254
    %v1369 = vtanh.pop %v1259
    %v1370 = vtanh.pop %v1264
    %v1371 = vtanh.pop %v1269
    %v1372 = vtanh.pop %v1274
    %v1373 = vtanh.pop %v1279
    %v1374 = vtanh.pop %v1284
    %v1375 = vtanh.pop %v1289
    %1376 = vst [vmem:[#allocation2] sm:$0xff] %v1292
    %1377 = vst [vmem:[#allocation2 + $0x8] sm:$0xff] %v1293
    %1378 = vst [vmem:[#allocation2 + $0x10] sm:$0xff] %v1294
    %1379 = vst [vmem:[#allocation2 + $0x18] sm:$0xff] %v1295
    %1380 = vst [vmem:[#allocation2 + $0x20] sm:$0xff] %v1296
    %1381 = vst [vmem:[#allocation2 + $0x28] sm:$0xff] %v1297
    %1382 = vst [vmem:[#allocation2 + $0x30] sm:$0xff] %v1298
    %1383 = vst [vmem:[#allocation2 + $0x38] sm:$0xff] %v1299
    %1384 = vst [vmem:[#allocation2 + $0x40] sm:$0xff] %v1300
    %1385 = vst [vmem:[#allocation2 + $0x48] sm:$0xff] %v1301
    %1386 = vst [vmem:[#allocation2 + $0x50] sm:$0xff] %v1302
    %1387 = vst [vmem:[#allocation2 + $0x58] sm:$0xff] %v1303
    %1388 = vst [vmem:[#allocation2 + $0x60] sm:$0xff] %v1304
    %1389 = vst [vmem:[#allocation2 + $0x68] sm:$0xff] %v1305
    %1390 = vst [vmem:[#allocation2 + $0x70] sm:$0xff] %v1306
    %1391 = vst [vmem:[#allocation2 + $0x78] sm:$0xff] %v1307
    %1392 = vst [vmem:[#allocation2 + $0x80] sm:$0xff] %v1308
    %1393 = vst [vmem:[#allocation2 + $0x88] sm:$0xff] %v1309
    %1394 = vst [vmem:[#allocation2 + $0x90] sm:$0xff] %v1310
    %1395 = vst [vmem:[#allocation2 + $0x98] sm:$0xff] %v1311
    %1396 = vst [vmem:[#allocation2 + $0xa0] sm:$0xff] %v1312
    %1397 = vst [vmem:[#allocation2 + $0xa8] sm:$0xff] %v1313
    %1398 = vst [vmem:[#allocation2 + $0xb0] sm:$0xff] %v1314
    %1399 = vst [vmem:[#allocation2 + $0xb8] sm:$0xff] %v1315
    %1400 = vst [vmem:[#allocation2 + $0xc0] sm:$0xff] %v1316
    %1401 = vst [vmem:[#allocation2 + $0xc8] sm:$0xff] %v1317
    %1402 = vst [vmem:[#allocation2 + $0xd0] sm:$0xff] %v1318
    %1403 = vst [vmem:[#allocation2 + $0xd8] sm:$0xff] %v1319
    %1404 = vst [vmem:[#allocation2 + $0xe0] sm:$0xff] %v1320
    %1405 = vst [vmem:[#allocation2 + $0xe8] sm:$0xff] %v1321
    %1406 = vst [vmem:[#allocation2 + $0xf0] sm:$0xff] %v1322
    %1407 = vst [vmem:[#allocation2 + $0xf8] sm:$0xff] %v1323
    %1408 = vst [vmem:[#allocation2 + $0x100] sm:$0xff] %v1324
    %1409 = vst [vmem:[#allocation2 + $0x108] sm:$0xff] %v1325
    %1410 = vst [vmem:[#allocation2 + $0x110] sm:$0xff] %v1326
    %1411 = vst [vmem:[#allocation2 + $0x118] sm:$0xff] %v1327
    %1412 = vst [vmem:[#allocation2 + $0x120] sm:$0xff] %v1328
    %1413 = vst [vmem:[#allocation2 + $0x128] sm:$0xff] %v1329
    %1414 = vst [vmem:[#allocation2 + $0x130] sm:$0xff] %v1330
    %1415 = vst [vmem:[#allocation2 + $0x138] sm:$0xff] %v1331
    %1416 = vst [vmem:[#allocation2 + $0x140] sm:$0xff] %v1332
    %1417 = vst [vmem:[#allocation2 + $0x148] sm:$0xff] %v1333
    %1418 = vst [vmem:[#allocation2 + $0x150] sm:$0xff] %v1334
    %1419 = vst [vmem:[#allocation2 + $0x158] sm:$0xff] %v1335
    %1420 = vst [vmem:[#allocation2 + $0x160] sm:$0xff] %v1336
    %1421 = vst [vmem:[#allocation2 + $0x168] sm:$0xff] %v1337
    %1422 = vst [vmem:[#allocation2 + $0x170] sm:$0xff] %v1338
    %1423 = vst [vmem:[#allocation2 + $0x178] sm:$0xff] %v1339
    %1424 = vst [vmem:[#allocation2 + $0x180] sm:$0xff] %v1340
    %1425 = vst [vmem:[#allocation2 + $0x188] sm:$0xff] %v1341
    %1426 = vst [vmem:[#allocation2 + $0x190] sm:$0xff] %v1342
    %1427 = vst [vmem:[#allocation2 + $0x198] sm:$0xff] %v1343
    %1428 = vst [vmem:[#allocation2 + $0x1a0] sm:$0xff] %v1344
    %1429 = vst [vmem:[#allocation2 + $0x1a8] sm:$0xff] %v1345
    %1430 = vst [vmem:[#allocation2 + $0x1b0] sm:$0xff] %v1346
    %1431 = vst [vmem:[#allocation2 + $0x1b8] sm:$0xff] %v1347
    %1432 = vst [vmem:[#allocation2 + $0x1c0] sm:$0xff] %v1348
    %1433 = vst [vmem:[#allocation2 + $0x1c8] sm:$0xff] %v1349
    %1434 = vst [vmem:[#allocation2 + $0x1d0] sm:$0xff] %v1350
    %1435 = vst [vmem:[#allocation2 + $0x1d8] sm:$0xff] %v1351
    %1436 = vst [vmem:[#allocation2 + $0x1e0] sm:$0xff] %v1352
    %1437 = vst [vmem:[#allocation2 + $0x1e8] sm:$0xff] %v1353
    %1438 = vst [vmem:[#allocation2 + $0x1f0] sm:$0xff] %v1354
    %1439 = vst [vmem:[#allocation2 + $0x1f8] sm:$0xff] %v1355
    %1440 = vst [vmem:[#allocation2 + $0x200] sm:$0xff] %v1356
    %1441 = vst [vmem:[#allocation2 + $0x208] sm:$0xff] %v1357
    %1442 = vst [vmem:[#allocation2 + $0x210] sm:$0xff] %v1358
    %1443 = vst [vmem:[#allocation2 + $0x218] sm:$0xff] %v1359
    %1444 = vst [vmem:[#allocation2 + $0x220] sm:$0xff] %v1360
    %1445 = vst [vmem:[#allocation2 + $0x228] sm:$0xff] %v1361
    %1446 = vst [vmem:[#allocation2 + $0x230] sm:$0xff] %v1362
    %1447 = vst [vmem:[#allocation2 + $0x238] sm:$0xff] %v1363
    %1448 = vst [vmem:[#allocation2 + $0x240] sm:$0xff] %v1364
    %1449 = vst [vmem:[#allocation2 + $0x248] sm:$0xff] %v1365
    %1450 = vst [vmem:[#allocation2 + $0x250] sm:$0xff] %v1366
    %1451 = vst [vmem:[#allocation2 + $0x258] sm:$0xff] %v1367
    %1452 = vst [vmem:[#allocation2 + $0x260] sm:$0xff] %v1368
    %1453 = vst [vmem:[#allocation2 + $0x268] sm:$0xff] %v1369
    %1454 = vst [vmem:[#allocation2 + $0x270] sm:$0xff] %v1370
    %1455 = vst [vmem:[#allocation2 + $0x278] sm:$0xff] %v1371
    %1456 = vst [vmem:[#allocation2 + $0x280] sm:$0xff] %v1372
    %1457 = vst [vmem:[#allocation2 + $0x288] sm:$0xff] %v1373
    %1458 = vst [vmem:[#allocation2 + $0x290] sm:$0xff] %v1374
    %1459 = vst [vmem:[#allocation2 + $0x298] sm:$0xff] %v1375
    // Predicated region
    $region14: #{conv2d_tanh.1} parent=1 // pred_check
      _
    $region15: #{conv2d_tanh.1} parent=1 // pred_check_branch
      %1461 = sbr.rel (0) target = $region17
    $region16: #{conv2d_tanh.1} parent=1 // pred_region
      %s1463 = ssub.s32 10752, 10752
      %1464 = vsyncadd [#allocation3], %s1463
      %s1465 = sshll.u32 [#allocation2], 4
      %s1466 = int_to_ptr.vmem [resolvable:$true] %s1465
      %1471 = dma.vmem_to_hbm [thread:$0]  %s1466, 10752, %s3, [#allocation3], 128, 128, 8
    $region17: #{conv2d_tanh.1} parent=1 // pred_fallthru
      _
    // Predicated region
    $region18: #{conv2d_tanh.1} parent=1 // pred_check
      _
    $region19: #{conv2d_tanh.1} parent=1 // pred_check_branch
      %1473 = sbr.rel (0) target = $region21
    $region20: #{conv2d_tanh.1} parent=1 // pred_region
      %1474 = dma.done [#allocation3], 10752
    $region21: #{conv2d_tanh.1} parent=1 // pred_fallthru
      _
    %1475 = vsyncpa [#allocation3], 1

</llo_original>
